<compile_context>
chip_gen: v7x
topology: tpu7x:2x2x1
jax: 0.10.0
libtpu: 0.0.40
codegen_flags: <defaults>
</compile_context>

<pallas_src>
import numpy as np
import jax
import jax.numpy as jnp
from jax.experimental import pallas as pl
from jax.experimental.pallas import tpu as pltpu

# ------------------------- configuration (small) -------------------------
SR = 24000
N_MELS = 8            # n_mels
OUT_CH = 16           # output_channels
DS_FACTOR = 8         # ds_factor (= hop_length)
OVERSAMPLE = 2
N_FFT = OVERSAMPLE * DS_FACTOR          # 16
HOP = DS_FACTOR                         # 8
N_FREQ = N_FFT // 2 + 1                 # onesided bins = 9
PAD_TOT = N_FFT - DS_FACTOR
PAD_LEFT, PAD_RIGHT = PAD_TOT // 2, PAD_TOT - PAD_TOT // 2
KSIZE = 3
DILATIONS = (1, 2, 4)


# --------------------- static constants (numpy glue) ---------------------
def _hz_to_mel_htk(f):
    return 2595.0 * np.log10(1.0 + f / 700.0)


def _mel_to_hz_htk(m):
    return 700.0 * (10.0 ** (m / 2595.0) - 1.0)


def _melscale_fbanks(n_freqs, f_min, f_max, n_mels, sr):
    # mirrors torchaudio.functional.melscale_fbanks(mel_scale="htk", norm=None)
    all_freqs = np.linspace(0.0, sr / 2.0, n_freqs)
    m_pts = np.linspace(_hz_to_mel_htk(f_min), _hz_to_mel_htk(f_max), n_mels + 2)
    f_pts = _mel_to_hz_htk(m_pts)
    f_diff = f_pts[1:] - f_pts[:-1]
    slopes = f_pts[None, :] - all_freqs[:, None]            # (n_freqs, n_mels+2)
    down = -slopes[:, :-2] / f_diff[:-1]
    up = slopes[:, 2:] / f_diff[1:]
    fb = np.maximum(0.0, np.minimum(down, up))
    return fb.astype(np.float32)                            # (n_freqs, n_mels)


def _dft_constants():
    """Window-folded one-sided DFT matrices, channel-major.

    Returns (wdft_a, wdft_b), each (2*N_FREQ, HOP), such that
        spec = wdft_a @ frame[:HOP] + wdft_b @ frame[HOP:]
    with rows 0..N_FREQ-1 = Re(X_k), rows N_FREQ.. = Im(X_k), periodic Hann
    window already folded in.
    """
    n = np.arange(N_FFT)
    win = 0.5 - 0.5 * np.cos(2.0 * np.pi * n / N_FFT)       # periodic Hann
    k = np.arange(N_FREQ)
    ang = 2.0 * np.pi * np.outer(k, n) / N_FFT              # (N_FREQ, N_FFT)
    wc = np.cos(ang) * win[None, :]
    ws = -np.sin(ang) * win[None, :]
    wdft = np.concatenate([wc, ws], axis=0).astype(np.float32)   # (2*N_FREQ, N_FFT)
    return wdft[:, :HOP].copy(), wdft[:, HOP:].copy()


_WDFT_A, _WDFT_B = (jnp.asarray(a) for a in _dft_constants())
# mel filterbank transposed + duplicated so that  mel = fb_fold @ (spec * spec)
_FB = _melscale_fbanks(N_FREQ, 0.0, SR / 2.0, N_MELS, SR)        # (N_FREQ, N_MELS)
_FB_FOLD = jnp.asarray(np.concatenate([_FB.T, _FB.T], axis=1))   # (N_MELS, 2*N_FREQ)


# ------------------------------ Pallas kernel ------------------------------
def _shift_time(x, s):
    """y[:, t] = x[:, t - s] with zero fill at the boundary.

    x: (C, F) value, time on the lane axis; s: static Python int.
    (This is the roll+mask the perf review asked for; the static lane slice /
    concat lowers to an XLU lane shift with the boundary zeroed.)
    """
    c, f = x.shape
    if s == 0:
        return x
    z = jnp.zeros((c, abs(s)), x.dtype)
    if s > 0:
        return jnp.concatenate([z, x[:, :f - s]], axis=1)
    return jnp.concatenate([x[:, -s:], z], axis=1)


def _conv_k3_same(x, w_ref, b_ref, dilation):
    """Channel-major 'same' Conv1d, kernel=3, dilation d.

    x: (Cin, F); w_ref: (3, Cout, Cin) (tap-major, tap k == PyTorch W[:, :, k]);
    b_ref: (Cout, 1).  Returns (Cout, F) float32.
    """
    d = dilation
    y = jnp.dot(w_ref[1], x, preferred_element_type=jnp.float32) + b_ref[...]
    y = y + jnp.dot(w_ref[0], _shift_time(x, d),
                    preferred_element_type=jnp.float32)      # tap 0 sees x[t - d]
    y = y + jnp.dot(w_ref[2], _shift_time(x, -d),
                    preferred_element_type=jnp.float32)      # tap 2 sees x[t + d]
    return y


def mel_adapter_kernel(hops_ref, wdft_a_ref, wdft_b_ref, fb_ref,
                       w_in_ref, b_in_ref,
                       w_c1_ref, b_c1_ref, w_c2_ref, b_c2_ref, w_c3_ref, b_c3_ref,
                       alpha_ref, out_ref):
    # --- MelSpectrogram (power=2, onesided, center=False), time on lanes ---
    hops = hops_ref[0]                                       # (HOP, F+1)
    f = hops.shape[1] - 1
    top = hops[:, :f]                                        # frame samples 0..HOP-1
    bot = hops[:, 1:f + 1]                                   # frame samples HOP..N_FFT-1
    # window-folded DFT: spec rows = [Re_0..Re_8, Im_0..Im_8]  -> (2*N_FREQ, F)
    spec = (jnp.dot(wdft_a_ref[...], top, preferred_element_type=jnp.float32) +
            jnp.dot(wdft_b_ref[...], bot, preferred_element_type=jnp.float32))
    # power spectrum + mel projection fused into one matmul (fb_fold = [fb^T|fb^T])
    mel = jnp.dot(fb_ref[...], spec * spec,
                  preferred_element_type=jnp.float32)        # (N_MELS, F)

    # --- norm = sqrt(mean_t(sum_mel(mel^2))); x /= clamp(norm, 1e-5) ---
    norm = jnp.sqrt(jnp.sum(mel * mel) * (1.0 / f))
    mel = mel * (1.0 / jnp.maximum(norm, 1e-5))

    # --- input Conv1d(n_mels -> C, k=3, padding='same') ---
    h = _conv_k3_same(mel, w_in_ref, b_in_ref, 1)            # (C, F)

    # --- ConvBlock: residual dilated convs, PReLU before each conv ---
    block = ((w_c1_ref, b_c1_ref, 1), (w_c2_ref, b_c2_ref, 2), (w_c3_ref, b_c3_ref, 4))
    for i, (w_ref, b_ref, d) in enumerate(block):
        a = alpha_ref[i]                                     # PReLU slope (scalar, SMEM)
        act = jnp.where(h > 0, h, a * h)
        h = h + _conv_k3_same(act, w_ref, b_ref, d)

    out_ref[0] = h.astype(out_ref.dtype)                     # lane-dense (OUT_CH, F)


# ------------------------------ wrapper (glue) ------------------------------
def init_params(key):
    """PyTorch-layout params: Conv1d weight (Cout, Cin, K), bias (Cout,)."""
    ks = jax.random.split(key, 8)

    def conv_w(k, cin, cout):
        return (jax.random.normal(k, (cout, cin, KSIZE), jnp.float32)
                / np.sqrt(cin * KSIZE))

    def conv_b(k, cout):
        return 0.01 * jax.random.normal(k, (cout,), jnp.float32)

    return {
        "w_in": conv_w(ks[0], N_MELS, OUT_CH), "b_in": conv_b(ks[1], OUT_CH),
        "w_c1": conv_w(ks[2], OUT_CH, OUT_CH), "b_c1": conv_b(ks[3], OUT_CH),
        "w_c2": conv_w(ks[4], OUT_CH, OUT_CH), "b_c2": conv_b(ks[5], OUT_CH),
        "w_c3": conv_w(ks[6], OUT_CH, OUT_CH), "b_c3": conv_b(ks[7], OUT_CH),
        # TODO(synk): if the original ConvBlock uses per-channel PReLU, alpha
        # becomes (3, OUT_CH) broadcast over lanes instead of scalars in SMEM.
        "alpha": jnp.full((len(DILATIONS),), 0.25, jnp.float32),
    }


@jax.jit
def mel_adapter_forward(x, params):
    """x: (B, 1, T) float32 waveform (PyTorch NCL). Returns (B, OUT_CH, T // DS_FACTOR)."""
    b, _, t = x.shape
    x = x.reshape(b, t)

    # padding identical to compute_mel_spec (static; shapes known at trace time)
    r = t % DS_FACTOR
    extra = (DS_FACTOR - r) % DS_FACTOR
    xp = jnp.pad(x, ((0, 0), (PAD_LEFT, extra + PAD_RIGHT)))
    length = xp.shape[-1]
    n_frames = (length - N_FFT) // HOP + 1                   # == (t + extra) // HOP

    # hop rows, time-on-lanes: hops[b, j, i] = xp[b, i*HOP + j].  Frame i is
    # hops[:, :, i] (samples 0..7) followed by hops[:, :, i+1] (samples 8..15),
    # so no 2x-duplicated framed copy ever touches HBM.
    hops = jnp.transpose(xp.reshape(b, n_frames + 1, HOP), (0, 2, 1))

    # tap-major conv weights (K, Cout, Cin) and lane-broadcastable biases (Cout, 1)
    def wt(w):
        return jnp.transpose(w, (2, 0, 1))

    def bt(bias):
        return bias.reshape(-1, 1)

    full2 = lambda bb: (0, 0)
    full3 = lambda bb: (0, 0, 0)

    # TODO(synk): for minute-long audio add a frame-tile grid axis (with an
    # 8-frame conv halo) and a two-pass normalization; whole-utterance blocks
    # are kept here because the per-utterance norm is a global reduction.
    out = pl.pallas_call(
        mel_adapter_kernel,
        out_shape=jax.ShapeDtypeStruct((b, OUT_CH, n_frames), jnp.float32),
        grid=(b,),
        in_specs=[
            pl.BlockSpec((1, HOP, n_frames + 1), lambda bb: (bb, 0, 0)),  # hop rows
            pl.BlockSpec((2 * N_FREQ, HOP), full2),                       # DFT (samples 0..7)
            pl.BlockSpec((2 * N_FREQ, HOP), full2),                       # DFT (samples 8..15)
            pl.BlockSpec((N_MELS, 2 * N_FREQ), full2),                    # folded mel fbank
            pl.BlockSpec((KSIZE, OUT_CH, N_MELS), full3),                 # w_in
            pl.BlockSpec((OUT_CH, 1), full2),                             # b_in
            pl.BlockSpec((KSIZE, OUT_CH, OUT_CH), full3),                 # w_c1
            pl.BlockSpec((OUT_CH, 1), full2),                             # b_c1
            pl.BlockSpec((KSIZE, OUT_CH, OUT_CH), full3),                 # w_c2
            pl.BlockSpec((OUT_CH, 1), full2),                             # b_c2
            pl.BlockSpec((KSIZE, OUT_CH, OUT_CH), full3),                 # w_c3
            pl.BlockSpec((OUT_CH, 1), full2),                             # b_c3
            pl.BlockSpec(memory_space=pltpu.MemorySpace.SMEM),            # PReLU alphas
        ],
        out_specs=pl.BlockSpec((1, OUT_CH, n_frames), lambda bb: (bb, 0, 0)),
        compiler_params=pltpu.CompilerParams(
            dimension_semantics=("parallel",),       # batch shards across TCs (v7x)
            vmem_limit_bytes=48 * 1024 * 1024,
        ),
    )(hops, _WDFT_A, _WDFT_B, _FB_FOLD,
      wt(params["w_in"]), bt(params["b_in"]),
      wt(params["w_c1"]), bt(params["b_c1"]),
      wt(params["w_c2"]), bt(params["b_c2"]),
      wt(params["w_c3"]), bt(params["b_c3"]),
      params["alpha"])

    # already PyTorch NCL (B, C, frames) -- no transpose pass needed
    return out


if __name__ == "__main__":
    key = jax.random.PRNGKey(0)
    kx, kp = jax.random.split(key)
    B, T = 2, 128
    x = jax.random.normal(kx, (B, 1, T), jnp.float32)        # (batch, 1, samples)
    params = init_params(kp)

    y = mel_adapter_forward(x, params)
    jax.block_until_ready(y)

    assert y.shape == (B, OUT_CH, T // DS_FACTOR), y.shape
    assert bool(jnp.all(jnp.isfinite(y)))
    print("KERNEL_OK")
</pallas_src>

<mosaic_0001>
module attributes {stable_mosaic.version = 11 : i64} {
  func.func @mel_adapter_kernel(%arg0: i32, %arg1: memref<1x8x17xf32, #tpu.memory_space<vmem>>, %arg2: memref<18x8xf32, #tpu.memory_space<vmem>>, %arg3: memref<18x8xf32, #tpu.memory_space<vmem>>, %arg4: memref<8x18xf32, #tpu.memory_space<vmem>>, %arg5: memref<3x16x8xf32, #tpu.memory_space<vmem>>, %arg6: memref<16x1xf32, #tpu.memory_space<vmem>>, %arg7: memref<3x16x16xf32, #tpu.memory_space<vmem>>, %arg8: memref<16x1xf32, #tpu.memory_space<vmem>>, %arg9: memref<3x16x16xf32, #tpu.memory_space<vmem>>, %arg10: memref<16x1xf32, #tpu.memory_space<vmem>>, %arg11: memref<3x16x16xf32, #tpu.memory_space<vmem>>, %arg12: memref<16x1xf32, #tpu.memory_space<vmem>>, %arg13: memref<3xf32, #tpu.memory_space<smem>>, %arg14: memref<1x16x16xf32, #tpu.memory_space<vmem>>) attributes {dimension_semantics = [#tpu.dimension_semantics<parallel>], iteration_bounds = array<i64: 2>, scalar_prefetch = 0 : i64, scratch_operands = 0 : i64, tpu.core_type = #tpu.core_type<tc>, window_params = [{transform_indices = @transform_0, window_bounds = array<i64: 1, 8, 17>}, {pipeline_mode = #tpu.pipeline_mode<synchronous>, transform_indices = @transform_1, window_bounds = array<i64: 18, 8>}, {pipeline_mode = #tpu.pipeline_mode<synchronous>, transform_indices = @transform_2, window_bounds = array<i64: 18, 8>}, {pipeline_mode = #tpu.pipeline_mode<synchronous>, transform_indices = @transform_3, window_bounds = array<i64: 8, 18>}, {pipeline_mode = #tpu.pipeline_mode<synchronous>, transform_indices = @transform_4, window_bounds = array<i64: 3, 16, 8>}, {pipeline_mode = #tpu.pipeline_mode<synchronous>, transform_indices = @transform_5, window_bounds = array<i64: 16, 1>}, {pipeline_mode = #tpu.pipeline_mode<synchronous>, transform_indices = @transform_6, window_bounds = array<i64: 3, 16, 16>}, {pipeline_mode = #tpu.pipeline_mode<synchronous>, transform_indices = @transform_7, window_bounds = array<i64: 16, 1>}, {pipeline_mode = #tpu.pipeline_mode<synchronous>, transform_indices = @transform_8, window_bounds = array<i64: 3, 16, 16>}, {pipeline_mode = #tpu.pipeline_mode<synchronous>, transform_indices = @transform_9, window_bounds = array<i64: 16, 1>}, {pipeline_mode = #tpu.pipeline_mode<synchronous>, transform_indices = @transform_10, window_bounds = array<i64: 3, 16, 16>}, {pipeline_mode = #tpu.pipeline_mode<synchronous>, transform_indices = @transform_11, window_bounds = array<i64: 16, 1>}, {transform_indices = @transform_12, window_bounds = array<i64: 3>}, {transform_indices = @transform_13, window_bounds = array<i64: 1, 16, 16>}]} {
    %c0 = arith.constant 0 : index
    %c0_0 = arith.constant 0 : index
    %c0_1 = arith.constant 0 : index
    %0 = vector.load %arg1[%c0, %c0_0, %c0_1] : memref<1x8x17xf32, #tpu.memory_space<vmem>>, vector<1x8x17xf32>
    %1 = vector.shape_cast %0 : vector<1x8x17xf32> to vector<8x17xf32>
    %2 = vector.extract_strided_slice %1 {offsets = [0, 0], sizes = [8, 16], strides = [1, 1]} : vector<8x17xf32> to vector<8x16xf32>
    %3 = vector.extract_strided_slice %1 {offsets = [0, 1], sizes = [8, 16], strides = [1, 1]} : vector<8x17xf32> to vector<8x16xf32>
    %c0_2 = arith.constant 0 : index
    %c0_3 = arith.constant 0 : index
    %4 = vector.load %arg2[%c0_2, %c0_3] : memref<18x8xf32, #tpu.memory_space<vmem>>, vector<18x8xf32>
    %cst = arith.constant dense<0.000000e+00> : vector<18x16xf32>
    %5 = tpu.matmul %4, %2, %cst {dimension_numbers = #tpu.dot_dimension_numbers<[1], [0], [0], [1], [0, 0, 1, 1], [], []>} : vector<18x8xf32>, vector<8x16xf32>, vector<18x16xf32> -> vector<18x16xf32>
    %c0_4 = arith.constant 0 : index
    %c0_5 = arith.constant 0 : index
    %6 = vector.load %arg3[%c0_4, %c0_5] : memref<18x8xf32, #tpu.memory_space<vmem>>, vector<18x8xf32>
    %cst_6 = arith.constant dense<0.000000e+00> : vector<18x16xf32>
    %7 = tpu.matmul %6, %3, %cst_6 {dimension_numbers = #tpu.dot_dimension_numbers<[1], [0], [0], [1], [0, 0, 1, 1], [], []>} : vector<18x8xf32>, vector<8x16xf32>, vector<18x16xf32> -> vector<18x16xf32>
    %8 = arith.addf %5, %7 : vector<18x16xf32>
    %c0_7 = arith.constant 0 : index
    %c0_8 = arith.constant 0 : index
    %9 = vector.load %arg4[%c0_7, %c0_8] : memref<8x18xf32, #tpu.memory_space<vmem>>, vector<8x18xf32>
    %10 = arith.mulf %8, %8 : vector<18x16xf32>
    %cst_9 = arith.constant dense<0.000000e+00> : vector<8x16xf32>
    %11 = tpu.matmul %9, %10, %cst_9 {dimension_numbers = #tpu.dot_dimension_numbers<[1], [0], [0], [1], [0, 0, 1, 1], [], []>} : vector<8x18xf32>, vector<18x16xf32>, vector<8x16xf32> -> vector<8x16xf32>
    %12 = arith.mulf %11, %11 : vector<8x16xf32>
    %13 = vector.shape_cast %12 : vector<8x16xf32> to vector<1x8x16xf32>
    %cst_10 = arith.constant dense<0.000000e+00> : vector<1xf32>
    %14 = vector.multi_reduction <add>, %13, %cst_10 [1, 2] : vector<1x8x16xf32> to vector<1xf32>
    %15 = vector.shape_cast %14 : vector<1xf32> to vector<1x1x1xf32>
    %16 = vector.extract %15[0, 0, 0] : f32 from vector<1x1x1xf32>
    %cst_11 = arith.constant 6.250000e-02 : f32
    %17 = arith.mulf %16, %cst_11 : f32
    %18 = math.sqrt %17 : f32
    %cst_12 = arith.constant 9.99999974E-6 : f32
    %19 = arith.maximumf %18, %cst_12 : f32
    %cst_13 = arith.constant 1.000000e+00 : f32
    %20 = arith.divf %cst_13, %19 : f32
    %21 = vector.broadcast %20 : f32 to vector<8x16xf32>
    %22 = arith.mulf %11, %21 : vector<8x16xf32>
    %c1 = arith.constant 1 : index
    %c0_14 = arith.constant 0 : index
    %c0_15 = arith.constant 0 : index
    %23 = vector.load %arg5[%c1, %c0_14, %c0_15] : memref<3x16x8xf32, #tpu.memory_space<vmem>>, vector<1x16x8xf32>
    %24 = vector.shape_cast %23 : vector<1x16x8xf32> to vector<16x8xf32>
    %cst_16 = arith.constant dense<0.000000e+00> : vector<16x16xf32>
    %25 = tpu.matmul %24, %22, %cst_16 {dimension_numbers = #tpu.dot_dimension_numbers<[1], [0], [0], [1], [0, 0, 1, 1], [], []>} : vector<16x8xf32>, vector<8x16xf32>, vector<16x16xf32> -> vector<16x16xf32>
    %c0_17 = arith.constant 0 : index
    %c0_18 = arith.constant 0 : index
    %26 = vector.load %arg6[%c0_17, %c0_18] : memref<16x1xf32, #tpu.memory_space<vmem>>, vector<16x1xf32>
    %27 = vector.broadcast %26 : vector<16x1xf32> to vector<16x16xf32>
    %28 = arith.addf %25, %27 : vector<16x16xf32>
    %c0_19 = arith.constant 0 : index
    %c0_20 = arith.constant 0 : index
    %c0_21 = arith.constant 0 : index
    %29 = vector.load %arg5[%c0_19, %c0_20, %c0_21] : memref<3x16x8xf32, #tpu.memory_space<vmem>>, vector<1x16x8xf32>
    %30 = vector.shape_cast %29 : vector<1x16x8xf32> to vector<16x8xf32>
    %cst_22 = arith.constant 0.000000e+00 : f32
    %31 = vector.broadcast %cst_22 : f32 to vector<8x1xf32>
    %32 = vector.extract_strided_slice %22 {offsets = [0, 0], sizes = [8, 15], strides = [1, 1]} : vector<8x16xf32> to vector<8x15xf32>
    %33 = tpu.concatenate %31, %32 in 1 : vector<8x1xf32>, vector<8x15xf32> -> vector<8x16xf32>
    %cst_23 = arith.constant dense<0.000000e+00> : vector<16x16xf32>
    %34 = tpu.matmul %30, %33, %cst_23 {dimension_numbers = #tpu.dot_dimension_numbers<[1], [0], [0], [1], [0, 0, 1, 1], [], []>} : vector<16x8xf32>, vector<8x16xf32>, vector<16x16xf32> -> vector<16x16xf32>
    %35 = arith.addf %28, %34 : vector<16x16xf32>
    %c2 = arith.constant 2 : index
    %c0_24 = arith.constant 0 : index
    %c0_25 = arith.constant 0 : index
    %36 = vector.load %arg5[%c2, %c0_24, %c0_25] : memref<3x16x8xf32, #tpu.memory_space<vmem>>, vector<1x16x8xf32>
    %37 = vector.shape_cast %36 : vector<1x16x8xf32> to vector<16x8xf32>
    %cst_26 = arith.constant 0.000000e+00 : f32
    %38 = vector.broadcast %cst_26 : f32 to vector<8x1xf32>
    %39 = vector.extract_strided_slice %22 {offsets = [0, 1], sizes = [8, 15], strides = [1, 1]} : vector<8x16xf32> to vector<8x15xf32>
    %40 = tpu.concatenate %39, %38 in 1 : vector<8x15xf32>, vector<8x1xf32> -> vector<8x16xf32>
    %cst_27 = arith.constant dense<0.000000e+00> : vector<16x16xf32>
    %41 = tpu.matmul %37, %40, %cst_27 {dimension_numbers = #tpu.dot_dimension_numbers<[1], [0], [0], [1], [0, 0, 1, 1], [], []>} : vector<16x8xf32>, vector<8x16xf32>, vector<16x16xf32> -> vector<16x16xf32>
    %42 = arith.addf %35, %41 : vector<16x16xf32>
    %c0_28 = arith.constant 0 : index
    %43 = memref.load %arg13[%c0_28] : memref<3xf32, #tpu.memory_space<smem>>
    %cst_29 = arith.constant 0.000000e+00 : f32
    %44 = vector.broadcast %cst_29 : f32 to vector<16x16xf32>
    %45 = arith.cmpf ogt, %42, %44 : vector<16x16xf32>
    %46 = vector.broadcast %43 : f32 to vector<16x16xf32>
    %47 = arith.mulf %46, %42 : vector<16x16xf32>
    %48 = arith.select %45, %42, %47 : vector<16x16xi1>, vector<16x16xf32>
    %c1_30 = arith.constant 1 : index
    %c0_31 = arith.constant 0 : index
    %c0_32 = arith.constant 0 : index
    %49 = vector.load %arg7[%c1_30, %c0_31, %c0_32] : memref<3x16x16xf32, #tpu.memory_space<vmem>>, vector<1x16x16xf32>
    %50 = vector.shape_cast %49 : vector<1x16x16xf32> to vector<16x16xf32>
    %cst_33 = arith.constant dense<0.000000e+00> : vector<16x16xf32>
    %51 = tpu.matmul %50, %48, %cst_33 {dimension_numbers = #tpu.dot_dimension_numbers<[1], [0], [0], [1], [0, 0, 1, 1], [], []>} : vector<16x16xf32>, vector<16x16xf32>, vector<16x16xf32> -> vector<16x16xf32>
    %c0_34 = arith.constant 0 : index
    %c0_35 = arith.constant 0 : index
    %52 = vector.load %arg8[%c0_34, %c0_35] : memref<16x1xf32, #tpu.memory_space<vmem>>, vector<16x1xf32>
    %53 = vector.broadcast %52 : vector<16x1xf32> to vector<16x16xf32>
    %54 = arith.addf %51, %53 : vector<16x16xf32>
    %c0_36 = arith.constant 0 : index
    %c0_37 = arith.constant 0 : index
    %c0_38 = arith.constant 0 : index
    %55 = vector.load %arg7[%c0_36, %c0_37, %c0_38] : memref<3x16x16xf32, #tpu.memory_space<vmem>>, vector<1x16x16xf32>
    %56 = vector.shape_cast %55 : vector<1x16x16xf32> to vector<16x16xf32>
    %cst_39 = arith.constant 0.000000e+00 : f32
    %57 = vector.broadcast %cst_39 : f32 to vector<16x1xf32>
    %58 = vector.extract_strided_slice %48 {offsets = [0, 0], sizes = [16, 15], strides = [1, 1]} : vector<16x16xf32> to vector<16x15xf32>
    %59 = tpu.concatenate %57, %58 in 1 : vector<16x1xf32>, vector<16x15xf32> -> vector<16x16xf32>
    %cst_40 = arith.constant dense<0.000000e+00> : vector<16x16xf32>
    %60 = tpu.matmul %56, %59, %cst_40 {dimension_numbers = #tpu.dot_dimension_numbers<[1], [0], [0], [1], [0, 0, 1, 1], [], []>} : vector<16x16xf32>, vector<16x16xf32>, vector<16x16xf32> -> vector<16x16xf32>
    %61 = arith.addf %54, %60 : vector<16x16xf32>
    %c2_41 = arith.constant 2 : index
    %c0_42 = arith.constant 0 : index
    %c0_43 = arith.constant 0 : index
    %62 = vector.load %arg7[%c2_41, %c0_42, %c0_43] : memref<3x16x16xf32, #tpu.memory_space<vmem>>, vector<1x16x16xf32>
    %63 = vector.shape_cast %62 : vector<1x16x16xf32> to vector<16x16xf32>
    %cst_44 = arith.constant 0.000000e+00 : f32
    %64 = vector.broadcast %cst_44 : f32 to vector<16x1xf32>
    %65 = vector.extract_strided_slice %48 {offsets = [0, 1], sizes = [16, 15], strides = [1, 1]} : vector<16x16xf32> to vector<16x15xf32>
    %66 = tpu.concatenate %65, %64 in 1 : vector<16x15xf32>, vector<16x1xf32> -> vector<16x16xf32>
    %cst_45 = arith.constant dense<0.000000e+00> : vector<16x16xf32>
    %67 = tpu.matmul %63, %66, %cst_45 {dimension_numbers = #tpu.dot_dimension_numbers<[1], [0], [0], [1], [0, 0, 1, 1], [], []>} : vector<16x16xf32>, vector<16x16xf32>, vector<16x16xf32> -> vector<16x16xf32>
    %68 = arith.addf %61, %67 : vector<16x16xf32>
    %69 = arith.addf %42, %68 : vector<16x16xf32>
    %c1_46 = arith.constant 1 : index
    %70 = memref.load %arg13[%c1_46] : memref<3xf32, #tpu.memory_space<smem>>
    %cst_47 = arith.constant 0.000000e+00 : f32
    %71 = vector.broadcast %cst_47 : f32 to vector<16x16xf32>
    %72 = arith.cmpf ogt, %69, %71 : vector<16x16xf32>
    %73 = vector.broadcast %70 : f32 to vector<16x16xf32>
    %74 = arith.mulf %73, %69 : vector<16x16xf32>
    %75 = arith.select %72, %69, %74 : vector<16x16xi1>, vector<16x16xf32>
    %c1_48 = arith.constant 1 : index
    %c0_49 = arith.constant 0 : index
    %c0_50 = arith.constant 0 : index
    %76 = vector.load %arg9[%c1_48, %c0_49, %c0_50] : memref<3x16x16xf32, #tpu.memory_space<vmem>>, vector<1x16x16xf32>
    %77 = vector.shape_cast %76 : vector<1x16x16xf32> to vector<16x16xf32>
    %cst_51 = arith.constant dense<0.000000e+00> : vector<16x16xf32>
    %78 = tpu.matmul %77, %75, %cst_51 {dimension_numbers = #tpu.dot_dimension_numbers<[1], [0], [0], [1], [0, 0, 1, 1], [], []>} : vector<16x16xf32>, vector<16x16xf32>, vector<16x16xf32> -> vector<16x16xf32>
    %c0_52 = arith.constant 0 : index
    %c0_53 = arith.constant 0 : index
    %79 = vector.load %arg10[%c0_52, %c0_53] : memref<16x1xf32, #tpu.memory_space<vmem>>, vector<16x1xf32>
    %80 = vector.broadcast %79 : vector<16x1xf32> to vector<16x16xf32>
    %81 = arith.addf %78, %80 : vector<16x16xf32>
    %c0_54 = arith.constant 0 : index
    %c0_55 = arith.constant 0 : index
    %c0_56 = arith.constant 0 : index
    %82 = vector.load %arg9[%c0_54, %c0_55, %c0_56] : memref<3x16x16xf32, #tpu.memory_space<vmem>>, vector<1x16x16xf32>
    %83 = vector.shape_cast %82 : vector<1x16x16xf32> to vector<16x16xf32>
    %cst_57 = arith.constant 0.000000e+00 : f32
    %84 = vector.broadcast %cst_57 : f32 to vector<16x2xf32>
    %85 = vector.extract_strided_slice %75 {offsets = [0, 0], sizes = [16, 14], strides = [1, 1]} : vector<16x16xf32> to vector<16x14xf32>
    %86 = tpu.concatenate %84, %85 in 1 : vector<16x2xf32>, vector<16x14xf32> -> vector<16x16xf32>
    %cst_58 = arith.constant dense<0.000000e+00> : vector<16x16xf32>
    %87 = tpu.matmul %83, %86, %cst_58 {dimension_numbers = #tpu.dot_dimension_numbers<[1], [0], [0], [1], [0, 0, 1, 1], [], []>} : vector<16x16xf32>, vector<16x16xf32>, vector<16x16xf32> -> vector<16x16xf32>
    %88 = arith.addf %81, %87 : vector<16x16xf32>
    %c2_59 = arith.constant 2 : index
    %c0_60 = arith.constant 0 : index
    %c0_61 = arith.constant 0 : index
    %89 = vector.load %arg9[%c2_59, %c0_60, %c0_61] : memref<3x16x16xf32, #tpu.memory_space<vmem>>, vector<1x16x16xf32>
    %90 = vector.shape_cast %89 : vector<1x16x16xf32> to vector<16x16xf32>
    %cst_62 = arith.constant 0.000000e+00 : f32
    %91 = vector.broadcast %cst_62 : f32 to vector<16x2xf32>
    %92 = vector.extract_strided_slice %75 {offsets = [0, 2], sizes = [16, 14], strides = [1, 1]} : vector<16x16xf32> to vector<16x14xf32>
    %93 = tpu.concatenate %92, %91 in 1 : vector<16x14xf32>, vector<16x2xf32> -> vector<16x16xf32>
    %cst_63 = arith.constant dense<0.000000e+00> : vector<16x16xf32>
    %94 = tpu.matmul %90, %93, %cst_63 {dimension_numbers = #tpu.dot_dimension_numbers<[1], [0], [0], [1], [0, 0, 1, 1], [], []>} : vector<16x16xf32>, vector<16x16xf32>, vector<16x16xf32> -> vector<16x16xf32>
    %95 = arith.addf %88, %94 : vector<16x16xf32>
    %96 = arith.addf %69, %95 : vector<16x16xf32>
    %c2_64 = arith.constant 2 : index
    %97 = memref.load %arg13[%c2_64] : memref<3xf32, #tpu.memory_space<smem>>
    %cst_65 = arith.constant 0.000000e+00 : f32
    %98 = vector.broadcast %cst_65 : f32 to vector<16x16xf32>
    %99 = arith.cmpf ogt, %96, %98 : vector<16x16xf32>
    %100 = vector.broadcast %97 : f32 to vector<16x16xf32>
    %101 = arith.mulf %100, %96 : vector<16x16xf32>
    %102 = arith.select %99, %96, %101 : vector<16x16xi1>, vector<16x16xf32>
    %c1_66 = arith.constant 1 : index
    %c0_67 = arith.constant 0 : index
    %c0_68 = arith.constant 0 : index
    %103 = vector.load %arg11[%c1_66, %c0_67, %c0_68] : memref<3x16x16xf32, #tpu.memory_space<vmem>>, vector<1x16x16xf32>
    %104 = vector.shape_cast %103 : vector<1x16x16xf32> to vector<16x16xf32>
    %cst_69 = arith.constant dense<0.000000e+00> : vector<16x16xf32>
    %105 = tpu.matmul %104, %102, %cst_69 {dimension_numbers = #tpu.dot_dimension_numbers<[1], [0], [0], [1], [0, 0, 1, 1], [], []>} : vector<16x16xf32>, vector<16x16xf32>, vector<16x16xf32> -> vector<16x16xf32>
    %c0_70 = arith.constant 0 : index
    %c0_71 = arith.constant 0 : index
    %106 = vector.load %arg12[%c0_70, %c0_71] : memref<16x1xf32, #tpu.memory_space<vmem>>, vector<16x1xf32>
    %107 = vector.broadcast %106 : vector<16x1xf32> to vector<16x16xf32>
    %108 = arith.addf %105, %107 : vector<16x16xf32>
    %c0_72 = arith.constant 0 : index
    %c0_73 = arith.constant 0 : index
    %c0_74 = arith.constant 0 : index
    %109 = vector.load %arg11[%c0_72, %c0_73, %c0_74] : memref<3x16x16xf32, #tpu.memory_space<vmem>>, vector<1x16x16xf32>
    %110 = vector.shape_cast %109 : vector<1x16x16xf32> to vector<16x16xf32>
    %cst_75 = arith.constant 0.000000e+00 : f32
    %111 = vector.broadcast %cst_75 : f32 to vector<16x4xf32>
    %112 = vector.extract_strided_slice %102 {offsets = [0, 0], sizes = [16, 12], strides = [1, 1]} : vector<16x16xf32> to vector<16x12xf32>
    %113 = tpu.concatenate %111, %112 in 1 : vector<16x4xf32>, vector<16x12xf32> -> vector<16x16xf32>
    %cst_76 = arith.constant dense<0.000000e+00> : vector<16x16xf32>
    %114 = tpu.matmul %110, %113, %cst_76 {dimension_numbers = #tpu.dot_dimension_numbers<[1], [0], [0], [1], [0, 0, 1, 1], [], []>} : vector<16x16xf32>, vector<16x16xf32>, vector<16x16xf32> -> vector<16x16xf32>
    %115 = arith.addf %108, %114 : vector<16x16xf32>
    %c2_77 = arith.constant 2 : index
    %c0_78 = arith.constant 0 : index
    %c0_79 = arith.constant 0 : index
    %116 = vector.load %arg11[%c2_77, %c0_78, %c0_79] : memref<3x16x16xf32, #tpu.memory_space<vmem>>, vector<1x16x16xf32>
    %117 = vector.shape_cast %116 : vector<1x16x16xf32> to vector<16x16xf32>
    %cst_80 = arith.constant 0.000000e+00 : f32
    %118 = vector.broadcast %cst_80 : f32 to vector<16x4xf32>
    %119 = vector.extract_strided_slice %102 {offsets = [0, 4], sizes = [16, 12], strides = [1, 1]} : vector<16x16xf32> to vector<16x12xf32>
    %120 = tpu.concatenate %119, %118 in 1 : vector<16x12xf32>, vector<16x4xf32> -> vector<16x16xf32>
    %cst_81 = arith.constant dense<0.000000e+00> : vector<16x16xf32>
    %121 = tpu.matmul %117, %120, %cst_81 {dimension_numbers = #tpu.dot_dimension_numbers<[1], [0], [0], [1], [0, 0, 1, 1], [], []>} : vector<16x16xf32>, vector<16x16xf32>, vector<16x16xf32> -> vector<16x16xf32>
    %122 = arith.addf %115, %121 : vector<16x16xf32>
    %123 = arith.addf %96, %122 : vector<16x16xf32>
    %c0_82 = arith.constant 0 : index
    %c0_83 = arith.constant 0 : index
    %c0_84 = arith.constant 0 : index
    %124 = vector.load %arg14[%c0_82, %c0_83, %c0_84] : memref<1x16x16xf32, #tpu.memory_space<vmem>>, vector<1x16x16xf32>
    %125 = vector.shape_cast %124 : vector<1x16x16xf32> to vector<16x16xf32>
    %126 = vector.shape_cast %123 : vector<16x16xf32> to vector<1x16x16xf32>
    tpu.vector_store %arg14[%c0_82, %c0_83, %c0_84], %126 {strides = array<i32>} : memref<1x16x16xf32, #tpu.memory_space<vmem>>, vector<1x16x16xf32>,
    return
  }
  func.func @transform_0(%arg0: i32) -> (i32, i32, i32) {
    %c0_i32 = arith.constant 0 : i32
    %c0_i32_0 = arith.constant 0 : i32
    %c0_i32_1 = arith.constant 0 : i32
    return %arg0, %c0_i32, %c0_i32_0 : i32, i32, i32
  }
  func.func @transform_1(%arg0: i32) -> (i32, i32) {
    %c0_i32 = arith.constant 0 : i32
    %c0_i32_0 = arith.constant 0 : i32
    %c0_i32_1 = arith.constant 0 : i32
    return %c0_i32, %c0_i32_0 : i32, i32
  }
  func.func @transform_2(%arg0: i32) -> (i32, i32) {
    %c0_i32 = arith.constant 0 : i32
    %c0_i32_0 = arith.constant 0 : i32
    %c0_i32_1 = arith.constant 0 : i32
    return %c0_i32, %c0_i32_0 : i32, i32
  }
  func.func @transform_3(%arg0: i32) -> (i32, i32) {
    %c0_i32 = arith.constant 0 : i32
    %c0_i32_0 = arith.constant 0 : i32
    %c0_i32_1 = arith.constant 0 : i32
    return %c0_i32, %c0_i32_0 : i32, i32
  }
  func.func @transform_4(%arg0: i32) -> (i32, i32, i32) {
    %c0_i32 = arith.constant 0 : i32
    %c0_i32_0 = arith.constant 0 : i32
    %c0_i32_1 = arith.constant 0 : i32
    %c0_i32_2 = arith.constant 0 : i32
    return %c0_i32, %c0_i32_0, %c0_i32_1 : i32, i32, i32
  }
  func.func @transform_5(%arg0: i32) -> (i32, i32) {
    %c0_i32 = arith.constant 0 : i32
    %c0_i32_0 = arith.constant 0 : i32
    %c0_i32_1 = arith.constant 0 : i32
    return %c0_i32, %c0_i32_0 : i32, i32
  }
  func.func @transform_6(%arg0: i32) -> (i32, i32, i32) {
    %c0_i32 = arith.constant 0 : i32
    %c0_i32_0 = arith.constant 0 : i32
    %c0_i32_1 = arith.constant 0 : i32
    %c0_i32_2 = arith.constant 0 : i32
    return %c0_i32, %c0_i32_0, %c0_i32_1 : i32, i32, i32
  }
  func.func @transform_7(%arg0: i32) -> (i32, i32) {
    %c0_i32 = arith.constant 0 : i32
    %c0_i32_0 = arith.constant 0 : i32
    %c0_i32_1 = arith.constant 0 : i32
    return %c0_i32, %c0_i32_0 : i32, i32
  }
  func.func @transform_8(%arg0: i32) -> (i32, i32, i32) {
    %c0_i32 = arith.constant 0 : i32
    %c0_i32_0 = arith.constant 0 : i32
    %c0_i32_1 = arith.constant 0 : i32
    %c0_i32_2 = arith.constant 0 : i32
    return %c0_i32, %c0_i32_0, %c0_i32_1 : i32, i32, i32
  }
  func.func @transform_9(%arg0: i32) -> (i32, i32) {
    %c0_i32 = arith.constant 0 : i32
    %c0_i32_0 = arith.constant 0 : i32
    %c0_i32_1 = arith.constant 0 : i32
    return %c0_i32, %c0_i32_0 : i32, i32
  }
  func.func @transform_10(%arg0: i32) -> (i32, i32, i32) {
    %c0_i32 = arith.constant 0 : i32
    %c0_i32_0 = arith.constant 0 : i32
    %c0_i32_1 = arith.constant 0 : i32
    %c0_i32_2 = arith.constant 0 : i32
    return %c0_i32, %c0_i32_0, %c0_i32_1 : i32, i32, i32
  }
  func.func @transform_11(%arg0: i32) -> (i32, i32) {
    %c0_i32 = arith.constant 0 : i32
    %c0_i32_0 = arith.constant 0 : i32
    %c0_i32_1 = arith.constant 0 : i32
    return %c0_i32, %c0_i32_0 : i32, i32
  }
  func.func @transform_12(%arg0: i32) -> i32 {
    %c0_i32 = arith.constant 0 : i32
    %c0_i32_0 = arith.constant 0 : i32
    return %c0_i32 : i32
  }
  func.func @transform_13(%arg0: i32) -> (i32, i32, i32) {
    %c0_i32 = arith.constant 0 : i32
    %c0_i32_0 = arith.constant 0 : i32
    %c0_i32_1 = arith.constant 0 : i32
    return %arg0, %c0_i32, %c0_i32_0 : i32, i32, i32
  }
}

</mosaic_0001>

<llo_original>
// kernel: mel_adapter_forward.1
$region0: #{mel_adapter_forward.1}
  #allocation0 [shape = 'u32[]', space=smem, size = 0x4, offset = 0x4, fixed_abs, tag = 'smem constant byte address 0x4 - core index']
  #allocation1 [shape = 'u32[144,128]{1,0:T(1,128)}', space=vmem, size = 0x12000, scoped, tag = 'internal scratch']
  %s0 = inlined_call_operand.vmem [shape: f32[2,8,17], index: 0, kind: input, shape index: {}]
  %s1 = inlined_call_operand.vmem [shape: f32[18,8], index: 1, kind: input, shape index: {}]
  %s2 = inlined_call_operand.vmem [shape: f32[18,8], index: 2, kind: input, shape index: {}]
  %s3 = inlined_call_operand.vmem [shape: f32[8,18], index: 3, kind: input, shape index: {}]
  %s4 = inlined_call_operand.vmem [shape: f32[3,16,8], index: 4, kind: input, shape index: {}]
  %s5 = inlined_call_operand.vmem [shape: f32[16,1], index: 5, kind: input, shape index: {}]
  %s6 = inlined_call_operand.vmem [shape: f32[3,16,16], index: 6, kind: input, shape index: {}]
  %s7 = inlined_call_operand.vmem [shape: f32[16,1], index: 7, kind: input, shape index: {}]
  %s8 = inlined_call_operand.vmem [shape: f32[3,16,16], index: 8, kind: input, shape index: {}]
  %s9 = inlined_call_operand.vmem [shape: f32[16,1], index: 9, kind: input, shape index: {}]
  %s10 = inlined_call_operand.vmem [shape: f32[3,16,16], index: 10, kind: input, shape index: {}]
  %s11 = inlined_call_operand.vmem [shape: f32[16,1], index: 11, kind: input, shape index: {}]
  %s12 = inlined_call_operand.vmem [shape: f32[3], index: 12, kind: input, shape index: {}]
  %s13 = inlined_call_operand.hbm [shape: f32[2,16,16], index: 13, kind: output, shape index: {}]
  %s14 = sld [smem:[#allocation0]]
  $region89: #{mel_adapter_forward.1} parent=0
    _
  %s16 = ssub.s32 1, %s14
  %s17 = scalar_select 0, %s16, %s14
  $region1: #{mel_adapter_forward.1} parent=0
    #allocation2 [shape = 'u8[512]{0}', space=smem, size = 0x200, scoped, tag = 'input window, operand 12, single buffered']
    #allocation3 [shape = 's32[2]{0}', space=sflag, size = 0x8, scoped, tag = 'scoped memory for mel_adapter_forward.1']
    #allocation4 [shape = 's32[2]{0}', space=sflag, size = 0x8, scoped, tag = 'scoped memory for mel_adapter_forward.1']
    #allocation5 [shape = 'u8[16384]{0}', space=vmem, size = 0x4000, scoped, tag = 'output window, operand 0']
    %18 = vsyncpa [#allocation4], 0
    %19 = vsyncpa [#allocation3], 0
    %s20 = scalar_lea.sflag [#allocation3], 1
    %21 = vsyncpa %s20, 0
    loop: start=0, step=1, limit=4
    $region2: #{mel_adapter_forward.1} parent=1 // loop_pre_header
      _
    $region3: #{mel_adapter_forward.1} parent=1 // loop_header
      %s23 = sphi 0, %s27
      %p24 = scmp.ge.s32.totalorder %s23, 4
      %s33 = sphi 0, %s35
      %s36 = sphi 0, %s33
      %s37 = sphi 0, %s36
      %s53 = sphi 0, %s37
      %s57 = sphi 0, %s57
      %s59 = sphi 0, %s57
      %s60 = sphi 0, %s59
      %s74 = sphi 0, %s60
      %s78 = sphi 0, %s78
      %s80 = sphi 0, %s78
      %s81 = sphi 0, %s80
      %s95 = sphi 0, %s81
      %s99 = sphi 0, %s99
      %s101 = sphi 0, %s99
      %s102 = sphi 0, %s101
      %s116 = sphi 0, %s102
      %s120 = sphi 0, %s120
      %s122 = sphi 0, %s120
      %s123 = sphi 0, %s122
      %s137 = sphi 0, %s123
      %s141 = sphi 0, %s141
      %s143 = sphi 0, %s141
      %s144 = sphi 0, %s143
      %s158 = sphi 0, %s144
      %s162 = sphi 0, %s162
      %s164 = sphi 0, %s162
      %s165 = sphi 0, %s164
      %s179 = sphi 0, %s165
      %s183 = sphi 0, %s183
      %s185 = sphi 0, %s183
      %s186 = sphi 0, %s185
      %s200 = sphi 0, %s186
      %s204 = sphi 0, %s204
      %s206 = sphi 0, %s204
      %s207 = sphi 0, %s206
      %s221 = sphi 0, %s207
      %s225 = sphi 0, %s225
      %s227 = sphi 0, %s225
      %s228 = sphi 0, %s227
      %s242 = sphi 0, %s228
      %s246 = sphi 0, %s246
      %s248 = sphi 0, %s246
      %s249 = sphi 0, %s248
      %s263 = sphi 0, %s249
      %s267 = sphi 0, %s267
      %s269 = sphi 0, %s267
      %s270 = sphi 0, %s269
      %s284 = sphi 0, %s270
      %s288 = sphi 0, %s288
      %s290 = sphi 0, %s288
      %s291 = sphi 0, %s290
      %s305 = sphi 0, %s291
      %s311 = sphi 0, %s313
      %s314 = sphi 0, %s311
      %s315 = sphi 0, %s314
      %s331 = sphi 0, %s315
    $region4: #{mel_adapter_forward.1} parent=1 // loop_header_branch
      %26 = sbr.rel (%p24) target = $region8
    $region5: #{mel_adapter_forward.1} parent=1 // loop_body
      %s28 = ssub.s32 %s23, 1
      %s29 = ssub.s32 %s23, 2
      %s30 = sadd.s32 %s23, 1
      %s31 = ssub.s32 %s23, %s30
      %p32 = scmp.eq.s32.totalorder %s31, 0
      %s34 = sadd.s32 %s33, 1
      %s35 = scalar_select %p32, %s33, %s34
      %p38 = pneg %p32
      %p39 = scmp.eq.s32.totalorder %s23, 1
      %p40 = por %p38, %p39
      %p41 = scmp.ne.s32.totalorder %s33, %s36
      %p42 = scmp.eq.s32.totalorder %s23, 0
      %p43 = por %p41, %p42
      %p44 = scmp.ne.s32.totalorder %s33, %s36
      %p45 = scmp.eq.s32.totalorder %s28, 1
      %p46 = por %p44, %p45
      %p47 = scmp.ne.s32.totalorder %s36, %s37
      %p48 = scmp.eq.s32.totalorder %s28, 0
      %p49 = por %p47, %p48
      %p50 = scmp.ne.s32.totalorder %s36, %s37
      %p51 = scmp.eq.s32.totalorder %s29, 1
      %p52 = por %p50, %p51
      %p54 = scmp.ne.s32.totalorder %s37, %s53
      %p55 = scmp.eq.s32.totalorder %s29, 0
      %p56 = por %p54, %p55
      %s58 = sadd.s32 %s57, 1
      %p61 = scmp.eq.s32.totalorder %s23, 1
      %p62 = scmp.ne.s32.totalorder %s57, %s59
      %p63 = scmp.eq.s32.totalorder %s23, 0
      %p64 = por %p62, %p63
      %p65 = scmp.ne.s32.totalorder %s57, %s59
      %p66 = scmp.eq.s32.totalorder %s28, 1
      %p67 = por %p65, %p66
      %p68 = scmp.ne.s32.totalorder %s59, %s60
      %p69 = scmp.eq.s32.totalorder %s28, 0
      %p70 = por %p68, %p69
      %p71 = scmp.ne.s32.totalorder %s59, %s60
      %p72 = scmp.eq.s32.totalorder %s29, 1
      %p73 = por %p71, %p72
      %p75 = scmp.ne.s32.totalorder %s60, %s74
      %p76 = scmp.eq.s32.totalorder %s29, 0
      %p77 = por %p75, %p76
      %s79 = sadd.s32 %s78, 1
      %p82 = scmp.eq.s32.totalorder %s23, 1
      %p83 = scmp.ne.s32.totalorder %s78, %s80
      %p84 = scmp.eq.s32.totalorder %s23, 0
      %p85 = por %p83, %p84
      %p86 = scmp.ne.s32.totalorder %s78, %s80
      %p87 = scmp.eq.s32.totalorder %s28, 1
      %p88 = por %p86, %p87
      %p89 = scmp.ne.s32.totalorder %s80, %s81
      %p90 = scmp.eq.s32.totalorder %s28, 0
      %p91 = por %p89, %p90
      %p92 = scmp.ne.s32.totalorder %s80, %s81
      %p93 = scmp.eq.s32.totalorder %s29, 1
      %p94 = por %p92, %p93
      %p96 = scmp.ne.s32.totalorder %s81, %s95
      %p97 = scmp.eq.s32.totalorder %s29, 0
      %p98 = por %p96, %p97
      %s100 = sadd.s32 %s99, 1
      %p103 = scmp.eq.s32.totalorder %s23, 1
      %p104 = scmp.ne.s32.totalorder %s99, %s101
      %p105 = scmp.eq.s32.totalorder %s23, 0
      %p106 = por %p104, %p105
      %p107 = scmp.ne.s32.totalorder %s99, %s101
      %p108 = scmp.eq.s32.totalorder %s28, 1
      %p109 = por %p107, %p108
      %p110 = scmp.ne.s32.totalorder %s101, %s102
      %p111 = scmp.eq.s32.totalorder %s28, 0
      %p112 = por %p110, %p111
      %p113 = scmp.ne.s32.totalorder %s101, %s102
      %p114 = scmp.eq.s32.totalorder %s29, 1
      %p115 = por %p113, %p114
      %p117 = scmp.ne.s32.totalorder %s102, %s116
      %p118 = scmp.eq.s32.totalorder %s29, 0
      %p119 = por %p117, %p118
      %s121 = sadd.s32 %s120, 1
      %p124 = scmp.eq.s32.totalorder %s23, 1
      %p125 = scmp.ne.s32.totalorder %s120, %s122
      %p126 = scmp.eq.s32.totalorder %s23, 0
      %p127 = por %p125, %p126
      %p128 = scmp.ne.s32.totalorder %s120, %s122
      %p129 = scmp.eq.s32.totalorder %s28, 1
      %p130 = por %p128, %p129
      %p131 = scmp.ne.s32.totalorder %s122, %s123
      %p132 = scmp.eq.s32.totalorder %s28, 0
      %p133 = por %p131, %p132
      %p134 = scmp.ne.s32.totalorder %s122, %s123
      %p135 = scmp.eq.s32.totalorder %s29, 1
      %p136 = por %p134, %p135
      %p138 = scmp.ne.s32.totalorder %s123, %s137
      %p139 = scmp.eq.s32.totalorder %s29, 0
      %p140 = por %p138, %p139
      %s142 = sadd.s32 %s141, 1
      %p145 = scmp.eq.s32.totalorder %s23, 1
      %p146 = scmp.ne.s32.totalorder %s141, %s143
      %p147 = scmp.eq.s32.totalorder %s23, 0
      %p148 = por %p146, %p147
      %p149 = scmp.ne.s32.totalorder %s141, %s143
      %p150 = scmp.eq.s32.totalorder %s28, 1
      %p151 = por %p149, %p150
      %p152 = scmp.ne.s32.totalorder %s143, %s144
      %p153 = scmp.eq.s32.totalorder %s28, 0
      %p154 = por %p152, %p153
      %p155 = scmp.ne.s32.totalorder %s143, %s144
      %p156 = scmp.eq.s32.totalorder %s29, 1
      %p157 = por %p155, %p156
      %p159 = scmp.ne.s32.totalorder %s144, %s158
      %p160 = scmp.eq.s32.totalorder %s29, 0
      %p161 = por %p159, %p160
      %s163 = sadd.s32 %s162, 1
      %p166 = scmp.eq.s32.totalorder %s23, 1
      %p167 = scmp.ne.s32.totalorder %s162, %s164
      %p168 = scmp.eq.s32.totalorder %s23, 0
      %p169 = por %p167, %p168
      %p170 = scmp.ne.s32.totalorder %s162, %s164
      %p171 = scmp.eq.s32.totalorder %s28, 1
      %p172 = por %p170, %p171
      %p173 = scmp.ne.s32.totalorder %s164, %s165
      %p174 = scmp.eq.s32.totalorder %s28, 0
      %p175 = por %p173, %p174
      %p176 = scmp.ne.s32.totalorder %s164, %s165
      %p177 = scmp.eq.s32.totalorder %s29, 1
      %p178 = por %p176, %p177
      %p180 = scmp.ne.s32.totalorder %s165, %s179
      %p181 = scmp.eq.s32.totalorder %s29, 0
      %p182 = por %p180, %p181
      %s184 = sadd.s32 %s183, 1
      %p187 = scmp.eq.s32.totalorder %s23, 1
      %p188 = scmp.ne.s32.totalorder %s183, %s185
      %p189 = scmp.eq.s32.totalorder %s23, 0
      %p190 = por %p188, %p189
      %p191 = scmp.ne.s32.totalorder %s183, %s185
      %p192 = scmp.eq.s32.totalorder %s28, 1
      %p193 = por %p191, %p192
      %p194 = scmp.ne.s32.totalorder %s185, %s186
      %p195 = scmp.eq.s32.totalorder %s28, 0
      %p196 = por %p194, %p195
      %p197 = scmp.ne.s32.totalorder %s185, %s186
      %p198 = scmp.eq.s32.totalorder %s29, 1
      %p199 = por %p197, %p198
      %p201 = scmp.ne.s32.totalorder %s186, %s200
      %p202 = scmp.eq.s32.totalorder %s29, 0
      %p203 = por %p201, %p202
      %s205 = sadd.s32 %s204, 1
      %p208 = scmp.eq.s32.totalorder %s23, 1
      %p209 = scmp.ne.s32.totalorder %s204, %s206
      %p210 = scmp.eq.s32.totalorder %s23, 0
      %p211 = por %p209, %p210
      %p212 = scmp.ne.s32.totalorder %s204, %s206
      %p213 = scmp.eq.s32.totalorder %s28, 1
      %p214 = por %p212, %p213
      %p215 = scmp.ne.s32.totalorder %s206, %s207
      %p216 = scmp.eq.s32.totalorder %s28, 0
      %p217 = por %p215, %p216
      %p218 = scmp.ne.s32.totalorder %s206, %s207
      %p219 = scmp.eq.s32.totalorder %s29, 1
      %p220 = por %p218, %p219
      %p222 = scmp.ne.s32.totalorder %s207, %s221
      %p223 = scmp.eq.s32.totalorder %s29, 0
      %p224 = por %p222, %p223
      %s226 = sadd.s32 %s225, 1
      %p229 = scmp.eq.s32.totalorder %s23, 1
      %p230 = scmp.ne.s32.totalorder %s225, %s227
      %p231 = scmp.eq.s32.totalorder %s23, 0
      %p232 = por %p230, %p231
      %p233 = scmp.ne.s32.totalorder %s225, %s227
      %p234 = scmp.eq.s32.totalorder %s28, 1
      %p235 = por %p233, %p234
      %p236 = scmp.ne.s32.totalorder %s227, %s228
      %p237 = scmp.eq.s32.totalorder %s28, 0
      %p238 = por %p236, %p237
      %p239 = scmp.ne.s32.totalorder %s227, %s228
      %p240 = scmp.eq.s32.totalorder %s29, 1
      %p241 = por %p239, %p240
      %p243 = scmp.ne.s32.totalorder %s228, %s242
      %p244 = scmp.eq.s32.totalorder %s29, 0
      %p245 = por %p243, %p244
      %s247 = sadd.s32 %s246, 1
      %p250 = scmp.eq.s32.totalorder %s23, 1
      %p251 = scmp.ne.s32.totalorder %s246, %s248
      %p252 = scmp.eq.s32.totalorder %s23, 0
      %p253 = por %p251, %p252
      %p254 = scmp.ne.s32.totalorder %s246, %s248
      %p255 = scmp.eq.s32.totalorder %s28, 1
      %p256 = por %p254, %p255
      %p257 = scmp.ne.s32.totalorder %s248, %s249
      %p258 = scmp.eq.s32.totalorder %s28, 0
      %p259 = por %p257, %p258
      %p260 = scmp.ne.s32.totalorder %s248, %s249
      %p261 = scmp.eq.s32.totalorder %s29, 1
      %p262 = por %p260, %p261
      %p264 = scmp.ne.s32.totalorder %s249, %s263
      %p265 = scmp.eq.s32.totalorder %s29, 0
      %p266 = por %p264, %p265
      %s268 = sadd.s32 %s267, 1
      %p271 = scmp.eq.s32.totalorder %s23, 1
      %p272 = scmp.ne.s32.totalorder %s267, %s269
      %p273 = scmp.eq.s32.totalorder %s23, 0
      %p274 = por %p272, %p273
      %p275 = scmp.ne.s32.totalorder %s267, %s269
      %p276 = scmp.eq.s32.totalorder %s28, 1
      %p277 = por %p275, %p276
      %p278 = scmp.ne.s32.totalorder %s269, %s270
      %p279 = scmp.eq.s32.totalorder %s28, 0
      %p280 = por %p278, %p279
      %p281 = scmp.ne.s32.totalorder %s269, %s270
      %p282 = scmp.eq.s32.totalorder %s29, 1
      %p283 = por %p281, %p282
      %p285 = scmp.ne.s32.totalorder %s270, %s284
      %p286 = scmp.eq.s32.totalorder %s29, 0
      %p287 = por %p285, %p286
      %s289 = sadd.s32 %s288, 1
      %p292 = scmp.eq.s32.totalorder %s23, 1
      %p293 = scmp.ne.s32.totalorder %s288, %s290
      %p294 = scmp.eq.s32.totalorder %s23, 0
      %p295 = por %p293, %p294
      %p296 = scmp.ne.s32.totalorder %s288, %s290
      %p297 = scmp.eq.s32.totalorder %s28, 1
      %p298 = por %p296, %p297
      %p299 = scmp.ne.s32.totalorder %s290, %s291
      %p300 = scmp.eq.s32.totalorder %s28, 0
      %p301 = por %p299, %p300
      %p302 = scmp.ne.s32.totalorder %s290, %s291
      %p303 = scmp.eq.s32.totalorder %s29, 1
      %p304 = por %p302, %p303
      %p306 = scmp.ne.s32.totalorder %s291, %s305
      %p307 = scmp.eq.s32.totalorder %s29, 0
      %p308 = por %p306, %p307
      %s309 = ssub.s32 %s23, %s30
      %p310 = scmp.eq.s32.totalorder %s309, 0
      %s312 = sadd.s32 %s311, 1
      %s313 = scalar_select %p310, %s311, %s312
      %p316 = pneg %p310
      %p317 = scmp.eq.s32.totalorder %s23, 1
      %p318 = por %p316, %p317
      %p319 = scmp.ne.s32.totalorder %s311, %s314
      %p320 = scmp.eq.s32.totalorder %s23, 0
      %p321 = por %p319, %p320
      %p322 = scmp.ne.s32.totalorder %s311, %s314
      %p323 = scmp.eq.s32.totalorder %s28, 1
      %p324 = por %p322, %p323
      %p325 = scmp.ne.s32.totalorder %s314, %s315
      %p326 = scmp.eq.s32.totalorder %s28, 0
      %p327 = por %p325, %p326
      %p328 = scmp.ne.s32.totalorder %s314, %s315
      %p329 = scmp.eq.s32.totalorder %s29, 1
      %p330 = por %p328, %p329
      %p332 = scmp.ne.s32.totalorder %s315, %s331
      %p333 = scmp.eq.s32.totalorder %s29, 0
      %p334 = por %p332, %p333
      %p335 = scmp.le.s32.totalorder 1, %s23
      %p336 = scmp.lt.s32.totalorder %s23, 3
      %p337 = pnand %p335, %p336
      %p338 = pneg %p337
      // Predicated region
      $region9: #{mel_adapter_forward.1} parent=5 // pred_check
        _
      $region10: #{mel_adapter_forward.1} parent=5 // pred_check_branch
        %340 = sbr.rel (%p337) target = $region12
      $region11: #{mel_adapter_forward.1} parent=5 // pred_region
        %s341 = ssub.s32 %s23, 1
        // Predicated region
        $region13: #{mel_adapter_forward.1} parent=11 // pred_check
          %p342 = pneg %p70
        $region14: #{mel_adapter_forward.1} parent=11 // pred_check_branch
          %344 = sbr.rel (%p342) target = $region16
        $region15: #{mel_adapter_forward.1} parent=11 // pred_region
          _
        $region16: #{mel_adapter_forward.1} parent=11 // pred_fallthru
          _
        // Predicated region
        $region17: #{mel_adapter_forward.1} parent=11 // pred_check
          %p345 = pneg %p91
        $region18: #{mel_adapter_forward.1} parent=11 // pred_check_branch
          %347 = sbr.rel (%p345) target = $region20
        $region19: #{mel_adapter_forward.1} parent=11 // pred_region
          _
        $region20: #{mel_adapter_forward.1} parent=11 // pred_fallthru
          _
        // Predicated region
        $region21: #{mel_adapter_forward.1} parent=11 // pred_check
          %p348 = pneg %p112
        $region22: #{mel_adapter_forward.1} parent=11 // pred_check_branch
          %350 = sbr.rel (%p348) target = $region24
        $region23: #{mel_adapter_forward.1} parent=11 // pred_region
          _
        $region24: #{mel_adapter_forward.1} parent=11 // pred_fallthru
          _
        // Predicated region
        $region25: #{mel_adapter_forward.1} parent=11 // pred_check
          %p351 = pneg %p133
        $region26: #{mel_adapter_forward.1} parent=11 // pred_check_branch
          %353 = sbr.rel (%p351) target = $region28
        $region27: #{mel_adapter_forward.1} parent=11 // pred_region
          _
        $region28: #{mel_adapter_forward.1} parent=11 // pred_fallthru
          _
        // Predicated region
        $region29: #{mel_adapter_forward.1} parent=11 // pred_check
          %p354 = pneg %p154
        $region30: #{mel_adapter_forward.1} parent=11 // pred_check_branch
          %356 = sbr.rel (%p354) target = $region32
        $region31: #{mel_adapter_forward.1} parent=11 // pred_region
          _
        $region32: #{mel_adapter_forward.1} parent=11 // pred_fallthru
          _
        // Predicated region
        $region33: #{mel_adapter_forward.1} parent=11 // pred_check
          %p357 = pneg %p175
        $region34: #{mel_adapter_forward.1} parent=11 // pred_check_branch
          %359 = sbr.rel (%p357) target = $region36
        $region35: #{mel_adapter_forward.1} parent=11 // pred_region
          _
        $region36: #{mel_adapter_forward.1} parent=11 // pred_fallthru
          _
        // Predicated region
        $region37: #{mel_adapter_forward.1} parent=11 // pred_check
          %p360 = pneg %p196
        $region38: #{mel_adapter_forward.1} parent=11 // pred_check_branch
          %362 = sbr.rel (%p360) target = $region40
        $region39: #{mel_adapter_forward.1} parent=11 // pred_region
          _
        $region40: #{mel_adapter_forward.1} parent=11 // pred_fallthru
          _
        // Predicated region
        $region41: #{mel_adapter_forward.1} parent=11 // pred_check
          %p363 = pneg %p217
        $region42: #{mel_adapter_forward.1} parent=11 // pred_check_branch
          %365 = sbr.rel (%p363) target = $region44
        $region43: #{mel_adapter_forward.1} parent=11 // pred_region
          _
        $region44: #{mel_adapter_forward.1} parent=11 // pred_fallthru
          _
        // Predicated region
        $region45: #{mel_adapter_forward.1} parent=11 // pred_check
          %p366 = pneg %p238
        $region46: #{mel_adapter_forward.1} parent=11 // pred_check_branch
          %368 = sbr.rel (%p366) target = $region48
        $region47: #{mel_adapter_forward.1} parent=11 // pred_region
          _
        $region48: #{mel_adapter_forward.1} parent=11 // pred_fallthru
          _
        // Predicated region
        $region49: #{mel_adapter_forward.1} parent=11 // pred_check
          %p369 = pneg %p259
        $region50: #{mel_adapter_forward.1} parent=11 // pred_check_branch
          %371 = sbr.rel (%p369) target = $region52
        $region51: #{mel_adapter_forward.1} parent=11 // pred_region
          _
        $region52: #{mel_adapter_forward.1} parent=11 // pred_fallthru
          _
        // Predicated region
        $region53: #{mel_adapter_forward.1} parent=11 // pred_check
          %p372 = pneg %p280
        $region54: #{mel_adapter_forward.1} parent=11 // pred_check_branch
          %374 = sbr.rel (%p372) target = $region56
        $region55: #{mel_adapter_forward.1} parent=11 // pred_region
          _
        $region56: #{mel_adapter_forward.1} parent=11 // pred_fallthru
          _
        // Predicated region
        $region57: #{mel_adapter_forward.1} parent=11 // pred_check
          %p375 = pneg %p301
        $region58: #{mel_adapter_forward.1} parent=11 // pred_check_branch
          %377 = sbr.rel (%p375) target = $region60
        $region59: #{mel_adapter_forward.1} parent=11 // pred_region
          %s379 = ssub.s32 16, 16
          %380 = vsyncadd [#allocation4], %s379
          %s382 = sshll.u32 %s12, 4
          %s383 = int_to_ptr.vmem [resolvable:$true] %s382
          %385 = dma.vmem_to_smem %s383, 16, [#allocation2], [#allocation4]
        $region60: #{mel_adapter_forward.1} parent=11 // pred_fallthru
          _
      $region12: #{mel_adapter_forward.1} parent=5 // pred_fallthru
        _
      %p386 = scmp.lt.s32.totalorder %s23, 2
      // Predicated region
      $region61: #{mel_adapter_forward.1} parent=5 // pred_check
        %p387 = pneg %p386
      $region62: #{mel_adapter_forward.1} parent=5 // pred_check_branch
        %389 = sbr.rel (%p387) target = $region64
      $region63: #{mel_adapter_forward.1} parent=5 // pred_region
        // Predicated region
        $region65: #{mel_adapter_forward.1} parent=63 // pred_check
          %p390 = pneg %p43
        $region66: #{mel_adapter_forward.1} parent=63 // pred_check_branch
          %392 = sbr.rel (%p390) target = $region68
        $region67: #{mel_adapter_forward.1} parent=63 // pred_region
          %p393 = scmp.lt.s32.totalorder %s23, 1
          %s394 = scalar_select %p393, %s23, 1
          %s395 = smul.addr %s394, 8
          %s396 = scalar_lea.vmem %s0, %s395
        $region68: #{mel_adapter_forward.1} parent=63 // pred_fallthru
          _
      $region64: #{mel_adapter_forward.1} parent=5 // pred_fallthru
        _
      %p397 = scmp.le.s32.totalorder 1, %s23
      %p398 = scmp.lt.s32.totalorder %s23, 3
      %p399 = pnand %p397, %p398
      %p400 = pneg %p399
      // Predicated region
      $region69: #{mel_adapter_forward.1} parent=5 // pred_check
        _
      $region70: #{mel_adapter_forward.1} parent=5 // pred_check_branch
        %402 = sbr.rel (%p399) target = $region72
      $region71: #{mel_adapter_forward.1} parent=5 // pred_region
        %s403 = ssub.s32 %s23, 1
        // Predicated region
        $region73: #{mel_adapter_forward.1} parent=71 // pred_check
          %p404 = pneg %p301
        $region74: #{mel_adapter_forward.1} parent=71 // pred_check_branch
          %406 = sbr.rel (%p404) target = $region76
        $region75: #{mel_adapter_forward.1} parent=71 // pred_region
          %407 = dma.done [#allocation4], 16
        $region76: #{mel_adapter_forward.1} parent=71 // pred_fallthru
          _
        %408 = sfence
        %p409 = scmp.lt.s32.totalorder %s28, 1
        %s410 = scalar_select %p409, %s28, 1
        %s411 = smul.addr %s410, 8
        %s412 = scalar_lea.vmem %s0, %s411
        %p413 = pneg %p49
        %p414 = pneg %p46
        %p415 = pneg %p70
        %p416 = pneg %p67
        %p417 = pneg %p91
        %p418 = pneg %p88
        %p419 = pneg %p112
        %p420 = pneg %p109
        %p421 = pneg %p133
        %p422 = pneg %p130
        %p423 = pneg %p154
        %p424 = pneg %p151
        %p425 = pneg %p175
        %p426 = pneg %p172
        %p427 = pneg %p196
        %p428 = pneg %p193
        %p429 = pneg %p217
        %p430 = pneg %p214
        %p431 = pneg %p238
        %p432 = pneg %p235
        %p433 = pneg %p259
        %p434 = pneg %p256
        %p435 = pneg %p280
        %p436 = pneg %p277
        %p437 = pneg %p301
        %p438 = pneg %p298
        %p439 = pneg %p327
        %p440 = pneg %p324
        %s441 = sand.u32 %s314, 1
        %s442 = scalar_lea.sflag [#allocation3], %s441
        %s443 = sand.u32 %s314, 1
        %s444 = smul.addr %s443, 16
        %s445 = scalar_lea.vmem [#allocation5], %s444
        %p446 = scmp.lt.s32.totalorder %s28, 1
        %s447 = scalar_select %p446, %s28, 1
        %s448 = smul.addr %s447, 8
        %s449 = scalar_lea.vmem %s0, %s448
        %v450 = vld [vmem:[%s449] sm:$0xff]
        %v451 = vld [vmem:[%s1] sm:$0xff]
        %v452 = vld [vmem:[%s1 + $0x8] sm:$0xff]
        %v453 = vld [vmem:[%s1 + $0x10] sm:$0x3]
        %v454 = vld [vmem:[%s2] sm:$0xff]
        %v455 = vld [vmem:[%s2 + $0x8] sm:$0xff]
        %v456 = vld [vmem:[%s2 + $0x10] sm:$0x3]
        %458 = vrot.lane.b32.xlu0 %v450, 127
        %v459 = vpop.permute.xlu0 %458
        %vm461 = vcmask 64512
        %v463 = vsel %vm461, %v454, 0
        %v466 = vsel %vm461, %v455, 0
        %v469 = vsel %vm461, %v456, 0
        %471 = vmatprep.subr.mxu0 0.0
        %472 = vmatpush1.msra.mxu0 %v459
        %473 = vmatprep.subr.mxu0 0.0
        %474 = vmatpush1.msra.mxu0 0.0
        %475 = vmatprep.subr.mxu0 0.0
        %476 = vmatpush1.msra.mxu0 0.0
        %477 = vmatprep.subr.mxu0 0.0
        %478 = vmatpush1.msra.mxu0 0.0
        %479 = vmatprep.subr.mxu0 0.0
        %480 = vmatpush1.msra.mxu0 0.0
        %481 = vmatprep.subr.mxu0 0.0
        %482 = vmatpush1.msra.mxu0 0.0
        %483 = vmatprep.subr.mxu0 0.0
        %484 = vmatpush1.msra.mxu0 0.0
        %485 = vmatprep.subr.mxu0 0.0
        %486 = vmatpush1.msra.mxu0 0.0
        %487 = vmatprep.subr.mxu0 0.0
        %488 = vmatpush1.msra.mxu0 0.0
        %489 = vmatprep.subr.mxu0 0.0
        %490 = vmatpush1.msra.mxu0 0.0
        %491 = vmatprep.subr.mxu0 0.0
        %492 = vmatpush1.msra.mxu0 0.0
        %493 = vmatprep.subr.mxu0 0.0
        %494 = vmatpush1.msra.mxu0 0.0
        %495 = vmatprep.subr.mxu0 0.0
        %496 = vmatpush1.msra.mxu0 0.0
        %497 = vmatprep.subr.mxu0 0.0
        %498 = vmatpush1.msra.mxu0 0.0
        %499 = vmatprep.subr.mxu0 0.0
        %500 = vmatpush1.msra.mxu0 0.0
        %501 = vmatprep.subr.mxu0 0.0
        %502 = vmatpush1.msra.mxu0 0.0
        %503 = vmatprep.subr.mxu0 0.0
        %504 = vmatpush1.msra.mxu0 0.0
        %505 = vmatprep.subr.mxu0 0.0
        %506 = vmatpush1.msra.mxu0 0.0
        %507 = vmatprep.subr.mxu0 0.0
        %508 = vmatpush1.msra.mxu0 0.0
        %509 = vmatprep.subr.mxu0 0.0
        %510 = vmatpush1.msra.mxu0 0.0
        %511 = vmatprep.subr.mxu0 0.0
        %512 = vmatpush1.msra.mxu0 0.0
        %513 = vmatprep.subr.mxu0 0.0
        %514 = vmatpush1.msra.mxu0 0.0
        %515 = vmatprep.subr.mxu0 0.0
        %516 = vmatpush1.msra.mxu0 0.0
        %517 = vmatprep.subr.mxu0 0.0
        %518 = vmatpush1.msra.mxu0 0.0
        %519 = vmatprep.subr.mxu0 0.0
        %520 = vmatpush1.msra.mxu0 0.0
        %521 = vmatprep.subr.mxu0 0.0
        %522 = vmatpush1.msra.mxu0 0.0
        %523 = vmatprep.subr.mxu0 0.0
        %524 = vmatpush1.msra.mxu0 0.0
        %525 = vmatprep.subr.mxu0 0.0
        %526 = vmatpush1.msra.mxu0 0.0
        %527 = vmatprep.subr.mxu0 0.0
        %528 = vmatpush1.msra.mxu0 0.0
        %529 = vmatprep.subr.mxu0 0.0
        %530 = vmatpush1.msra.mxu0 0.0
        %531 = vmatprep.subr.mxu0 0.0
        %532 = vmatpush1.msra.mxu0 0.0
        %533 = vmatprep.subr.mxu0 0.0
        %534 = vmatpush1.msra.mxu0 0.0
        %535 = vmatprep.mubr.f32.mxu0 0.0
        %536 = vmatmul.mubr.f32.gmra.mrb[0].mxu0 %v463
        %v537 = vpop.f32.mrb[0].mxu0
        %v538 = vadd.f32 0.0, %v537
        %v539 = vpop.f32.mrb[0].mxu0
        %540 = vmatprep.mubr.f32.mxu0 0.0
        %541 = vmatmul.mubr.f32.gmra.mrb[0].mxu0 %v466
        %v542 = vpop.f32.mrb[0].mxu0
        %v543 = vadd.f32 0.0, %v542
        %v544 = vpop.f32.mrb[0].mxu0
        %545 = vmatprep.mubr.f32.mxu0 0.0
        %546 = vmatmul.mubr.f32.gmra.mrb[0].mxu0 %v469
        %v547 = vpop.f32.mrb[0].mxu0
        %v548 = vadd.f32 0.0, %v547
        %v549 = vpop.f32.mrb[0].mxu0
        %550 = vdwg.mxu0
        %v552 = vsel %vm461, %v451, 0
        %v555 = vsel %vm461, %v452, 0
        %v558 = vsel %vm461, %v453, 0
        %560 = vmatprep.subr.mxu0 0.0
        %561 = vmatpush1.msra.mxu0 %v450
        %562 = vmatprep.subr.mxu0 0.0
        %563 = vmatpush1.msra.mxu0 0.0
        %564 = vmatprep.subr.mxu0 0.0
        %565 = vmatpush1.msra.mxu0 0.0
        %566 = vmatprep.subr.mxu0 0.0
        %567 = vmatpush1.msra.mxu0 0.0
        %568 = vmatprep.subr.mxu0 0.0
        %569 = vmatpush1.msra.mxu0 0.0
        %570 = vmatprep.subr.mxu0 0.0
        %571 = vmatpush1.msra.mxu0 0.0
        %572 = vmatprep.subr.mxu0 0.0
        %573 = vmatpush1.msra.mxu0 0.0
        %574 = vmatprep.subr.mxu0 0.0
        %575 = vmatpush1.msra.mxu0 0.0
        %576 = vmatprep.subr.mxu0 0.0
        %577 = vmatpush1.msra.mxu0 0.0
        %578 = vmatprep.subr.mxu0 0.0
        %579 = vmatpush1.msra.mxu0 0.0
        %580 = vmatprep.subr.mxu0 0.0
        %581 = vmatpush1.msra.mxu0 0.0
        %582 = vmatprep.subr.mxu0 0.0
        %583 = vmatpush1.msra.mxu0 0.0
        %584 = vmatprep.subr.mxu0 0.0
        %585 = vmatpush1.msra.mxu0 0.0
        %586 = vmatprep.subr.mxu0 0.0
        %587 = vmatpush1.msra.mxu0 0.0
        %588 = vmatprep.subr.mxu0 0.0
        %589 = vmatpush1.msra.mxu0 0.0
        %590 = vmatprep.subr.mxu0 0.0
        %591 = vmatpush1.msra.mxu0 0.0
        %592 = vmatprep.subr.mxu0 0.0
        %593 = vmatpush1.msra.mxu0 0.0
        %594 = vmatprep.subr.mxu0 0.0
        %595 = vmatpush1.msra.mxu0 0.0
        %596 = vmatprep.subr.mxu0 0.0
        %597 = vmatpush1.msra.mxu0 0.0
        %598 = vmatprep.subr.mxu0 0.0
        %599 = vmatpush1.msra.mxu0 0.0
        %600 = vmatprep.subr.mxu0 0.0
        %601 = vmatpush1.msra.mxu0 0.0
        %602 = vmatprep.subr.mxu0 0.0
        %603 = vmatpush1.msra.mxu0 0.0
        %604 = vmatprep.subr.mxu0 0.0
        %605 = vmatpush1.msra.mxu0 0.0
        %606 = vmatprep.subr.mxu0 0.0
        %607 = vmatpush1.msra.mxu0 0.0
        %608 = vmatprep.subr.mxu0 0.0
        %609 = vmatpush1.msra.mxu0 0.0
        %610 = vmatprep.subr.mxu0 0.0
        %611 = vmatpush1.msra.mxu0 0.0
        %612 = vmatprep.subr.mxu0 0.0
        %613 = vmatpush1.msra.mxu0 0.0
        %614 = vmatprep.subr.mxu0 0.0
        %615 = vmatpush1.msra.mxu0 0.0
        %616 = vmatprep.subr.mxu0 0.0
        %617 = vmatpush1.msra.mxu0 0.0
        %618 = vmatprep.subr.mxu0 0.0
        %619 = vmatpush1.msra.mxu0 0.0
        %620 = vmatprep.subr.mxu0 0.0
        %621 = vmatpush1.msra.mxu0 0.0
        %622 = vmatprep.subr.mxu0 0.0
        %623 = vmatpush1.msra.mxu0 0.0
        %624 = vmatprep.mubr.f32.mxu0 0.0
        %625 = vmatmul.mubr.f32.gmra.mrb[0].mxu0 %v552
        %v626 = vpop.f32.mrb[0].mxu0
        %v627 = vadd.f32 %v538, %v626
        %v628 = vpop.f32.mrb[0].mxu0
        %629 = vmatprep.mubr.f32.mxu0 0.0
        %630 = vmatmul.mubr.f32.gmra.mrb[0].mxu0 %v555
        %v631 = vpop.f32.mrb[0].mxu0
        %v632 = vadd.f32 %v543, %v631
        %v633 = vpop.f32.mrb[0].mxu0
        %634 = vmatprep.mubr.f32.mxu0 0.0
        %635 = vmatmul.mubr.f32.gmra.mrb[0].mxu0 %v558
        %v636 = vpop.f32.mrb[0].mxu0
        %v637 = vadd.f32 %v548, %v636
        %v638 = vpop.f32.mrb[0].mxu0
        %639 = vdwg.mxu0
        %v640 = vld [vmem:[%s3] sm:$0xff]
        %v641 = vmul.f32 %v627, %v627
        %v642 = vmul.f32 %v632, %v632
        %v643 = vmul.f32 %v637, %v637
        %vm644 = vcmask 146432
        %v646 = vsel %vm644, %v640, 0
        %vm648 = vcmask 1041408
        %v650 = vsel %vm648, %v643, 0
        %652 = vmatprep.subr.mxu0 0.0
        %653 = vmatpush1.msra.mxu0 %v641
        %654 = vmatprep.subr.mxu0 0.0
        %655 = vmatpush1.msra.mxu0 %v642
        %656 = vmatprep.subr.mxu0 0.0
        %657 = vmatpush1.msra.mxu0 %v650
        %658 = vmatprep.subr.mxu0 0.0
        %659 = vmatpush1.msra.mxu0 0.0
        %660 = vmatprep.subr.mxu0 0.0
        %661 = vmatpush1.msra.mxu0 0.0
        %662 = vmatprep.subr.mxu0 0.0
        %663 = vmatpush1.msra.mxu0 0.0
        %664 = vmatprep.subr.mxu0 0.0
        %665 = vmatpush1.msra.mxu0 0.0
        %666 = vmatprep.subr.mxu0 0.0
        %667 = vmatpush1.msra.mxu0 0.0
        %668 = vmatprep.subr.mxu0 0.0
        %669 = vmatpush1.msra.mxu0 0.0
        %670 = vmatprep.subr.mxu0 0.0
        %671 = vmatpush1.msra.mxu0 0.0
        %672 = vmatprep.subr.mxu0 0.0
        %673 = vmatpush1.msra.mxu0 0.0
        %674 = vmatprep.subr.mxu0 0.0
        %675 = vmatpush1.msra.mxu0 0.0
        %676 = vmatprep.subr.mxu0 0.0
        %677 = vmatpush1.msra.mxu0 0.0
        %678 = vmatprep.subr.mxu0 0.0
        %679 = vmatpush1.msra.mxu0 0.0
        %680 = vmatprep.subr.mxu0 0.0
        %681 = vmatpush1.msra.mxu0 0.0
        %682 = vmatprep.subr.mxu0 0.0
        %683 = vmatpush1.msra.mxu0 0.0
        %684 = vmatprep.subr.mxu0 0.0
        %685 = vmatpush1.msra.mxu0 0.0
        %686 = vmatprep.subr.mxu0 0.0
        %687 = vmatpush1.msra.mxu0 0.0
        %688 = vmatprep.subr.mxu0 0.0
        %689 = vmatpush1.msra.mxu0 0.0
        %690 = vmatprep.subr.mxu0 0.0
        %691 = vmatpush1.msra.mxu0 0.0
        %692 = vmatprep.subr.mxu0 0.0
        %693 = vmatpush1.msra.mxu0 0.0
        %694 = vmatprep.subr.mxu0 0.0
        %695 = vmatpush1.msra.mxu0 0.0
        %696 = vmatprep.subr.mxu0 0.0
        %697 = vmatpush1.msra.mxu0 0.0
        %698 = vmatprep.subr.mxu0 0.0
        %699 = vmatpush1.msra.mxu0 0.0
        %700 = vmatprep.subr.mxu0 0.0
        %701 = vmatpush1.msra.mxu0 0.0
        %702 = vmatprep.subr.mxu0 0.0
        %703 = vmatpush1.msra.mxu0 0.0
        %704 = vmatprep.subr.mxu0 0.0
        %705 = vmatpush1.msra.mxu0 0.0
        %706 = vmatprep.subr.mxu0 0.0
        %707 = vmatpush1.msra.mxu0 0.0
        %708 = vmatprep.subr.mxu0 0.0
        %709 = vmatpush1.msra.mxu0 0.0
        %710 = vmatprep.subr.mxu0 0.0
        %711 = vmatpush1.msra.mxu0 0.0
        %712 = vmatprep.subr.mxu0 0.0
        %713 = vmatpush1.msra.mxu0 0.0
        %714 = vmatprep.subr.mxu0 0.0
        %715 = vmatpush1.msra.mxu0 0.0
        %716 = vmatprep.mubr.f32.mxu0 0.0
        %717 = vmatmul.mubr.f32.gmra.mrb[0].mxu0 %v646
        %v718 = vpop.f32.mrb[0].mxu0
        %v719 = vadd.f32 0.0, %v718
        %v720 = vpop.f32.mrb[0].mxu0
        %721 = vdwg.mxu0
        %v722 = vmul.f32 %v719, %v719
        %vm723 = vcmask 130048
        %v724 = vsel %vm723, %v722, 0.0
        %725 = vadd.xlane.f32.xlu0 %v724
        %v726 = vpop.xlane.xlu0 %725
        %v727 = vrot.slane %v726, 4
        %v728 = vadd.f32 %v726, %v727
        %v729 = vrot.slane %v728, 2
        %v730 = vadd.f32 %v728, %v729
        %v731 = vrot.slane %v730, 1
        %v732 = vadd.f32 %v730, %v731
        %s733 = vtos %v732
        %s734 = smul.f32 %s733, 0.0625
        %v735 = vstv %s734
        %v736 = vrsqrt.pop %v735
        %v737 = vmul.f32 %v735, %v736
        %vm738 = vcmp.eq.f32.partialorder %v735, inf
        %v739 = vsel %vm738, %v735, %v737
        %vm740 = vcmp.eq.f32.partialorder %v735, 0.0
        %v741 = vand.u32 %v735, 2147483648
        %v742 = vsel %vm740, %v741, %v739
        %s743 = vtos %v742
        %s744 = smax.f32 %s743, 1e-05
        %v745 = vstv %s744
        %v746 = vrcp.pop %v745
        %s747 = vtos %v746
        %v748 = vstv %s747
        %v749 = vmul.f32 %v719, %v748
        %s750 = scalar_lea.vmem %s4, 16
        %v751 = vld [vmem:[%s750] sm:$0xff]
        %v752 = vld [vmem:[%s750 + $0x8] sm:$0xff]
        %v753 = vld [vmem:[%s5] sm:$0xff]
        %v754 = vld [vmem:[%s5 + $0x8] sm:$0xff]
        %756 = vset.pattern.permute.xlu0 0
        %757 = vperm.xlu0 %756, %v753
        %v758 = vpop.permute.xlu0 %757
        %761 = vset.pattern.permute.xlu0 0
        %762 = vperm.xlu0 %761, %v754
        %v763 = vpop.permute.xlu0 %762
        %v766 = vsel %vm461, %v751, 0
        %v769 = vsel %vm461, %v752, 0
        %771 = vmatprep.subr.mxu0 0.0
        %772 = vmatpush1.msra.mxu0 %v749
        %773 = vmatprep.subr.mxu0 0.0
        %774 = vmatpush1.msra.mxu0 0.0
        %775 = vmatprep.subr.mxu0 0.0
        %776 = vmatpush1.msra.mxu0 0.0
        %777 = vmatprep.subr.mxu0 0.0
        %778 = vmatpush1.msra.mxu0 0.0
        %779 = vmatprep.subr.mxu0 0.0
        %780 = vmatpush1.msra.mxu0 0.0
        %781 = vmatprep.subr.mxu0 0.0
        %782 = vmatpush1.msra.mxu0 0.0
        %783 = vmatprep.subr.mxu0 0.0
        %784 = vmatpush1.msra.mxu0 0.0
        %785 = vmatprep.subr.mxu0 0.0
        %786 = vmatpush1.msra.mxu0 0.0
        %787 = vmatprep.subr.mxu0 0.0
        %788 = vmatpush1.msra.mxu0 0.0
        %789 = vmatprep.subr.mxu0 0.0
        %790 = vmatpush1.msra.mxu0 0.0
        %791 = vmatprep.subr.mxu0 0.0
        %792 = vmatpush1.msra.mxu0 0.0
        %793 = vmatprep.subr.mxu0 0.0
        %794 = vmatpush1.msra.mxu0 0.0
        %795 = vmatprep.subr.mxu0 0.0
        %796 = vmatpush1.msra.mxu0 0.0
        %797 = vmatprep.subr.mxu0 0.0
        %798 = vmatpush1.msra.mxu0 0.0
        %799 = vmatprep.subr.mxu0 0.0
        %800 = vmatpush1.msra.mxu0 0.0
        %801 = vmatprep.subr.mxu0 0.0
        %802 = vmatpush1.msra.mxu0 0.0
        %803 = vmatprep.subr.mxu0 0.0
        %804 = vmatpush1.msra.mxu0 0.0
        %805 = vmatprep.subr.mxu0 0.0
        %806 = vmatpush1.msra.mxu0 0.0
        %807 = vmatprep.subr.mxu0 0.0
        %808 = vmatpush1.msra.mxu0 0.0
        %809 = vmatprep.subr.mxu0 0.0
        %810 = vmatpush1.msra.mxu0 0.0
        %811 = vmatprep.subr.mxu0 0.0
        %812 = vmatpush1.msra.mxu0 0.0
        %813 = vmatprep.subr.mxu0 0.0
        %814 = vmatpush1.msra.mxu0 0.0
        %815 = vmatprep.subr.mxu0 0.0
        %816 = vmatpush1.msra.mxu0 0.0
        %817 = vmatprep.subr.mxu0 0.0
        %818 = vmatpush1.msra.mxu0 0.0
        %819 = vmatprep.subr.mxu0 0.0
        %820 = vmatpush1.msra.mxu0 0.0
        %821 = vmatprep.subr.mxu0 0.0
        %822 = vmatpush1.msra.mxu0 0.0
        %823 = vmatprep.subr.mxu0 0.0
        %824 = vmatpush1.msra.mxu0 0.0
        %825 = vmatprep.subr.mxu0 0.0
        %826 = vmatpush1.msra.mxu0 0.0
        %827 = vmatprep.subr.mxu0 0.0
        %828 = vmatpush1.msra.mxu0 0.0
        %829 = vmatprep.subr.mxu0 0.0
        %830 = vmatpush1.msra.mxu0 0.0
        %831 = vmatprep.subr.mxu0 0.0
        %832 = vmatpush1.msra.mxu0 0.0
        %833 = vmatprep.subr.mxu0 0.0
        %834 = vmatpush1.msra.mxu0 0.0
        %835 = vmatprep.mubr.f32.mxu0 0.0
        %836 = vmatmul.mubr.f32.gmra.mrb[0].mxu0 %v766
        %v837 = vpop.f32.mrb[0].mxu0
        %v838 = vadd.f32 %v758, %v837
        %v839 = vpop.f32.mrb[0].mxu0
        %840 = vmatprep.mubr.f32.mxu0 0.0
        %841 = vmatmul.mubr.f32.gmra.mrb[0].mxu0 %v769
        %v842 = vpop.f32.mrb[0].mxu0
        %v843 = vadd.f32 %v763, %v842
        %v844 = vpop.f32.mrb[0].mxu0
        %845 = vdwg.mxu0
        %v846 = vld [vmem:[%s4] sm:$0xff]
        %v847 = vld [vmem:[%s4 + $0x8] sm:$0xff]
        %849 = vrot.lane.b32.xlu0 %v749, 1
        %v850 = vpop.permute.xlu0 %849
        %vm852 = vcmask 7168
        %v853 = vsel %vm852, 0.0, %v850
        %v855 = vsel %vm461, %v846, 0
        %v858 = vsel %vm461, %v847, 0
        %860 = vmatprep.subr.mxu0 0.0
        %861 = vmatpush1.msra.mxu0 %v853
        %862 = vmatprep.subr.mxu0 0.0
        %863 = vmatpush1.msra.mxu0 0.0
        %864 = vmatprep.subr.mxu0 0.0
        %865 = vmatpush1.msra.mxu0 0.0
        %866 = vmatprep.subr.mxu0 0.0
        %867 = vmatpush1.msra.mxu0 0.0
        %868 = vmatprep.subr.mxu0 0.0
        %869 = vmatpush1.msra.mxu0 0.0
        %870 = vmatprep.subr.mxu0 0.0
        %871 = vmatpush1.msra.mxu0 0.0
        %872 = vmatprep.subr.mxu0 0.0
        %873 = vmatpush1.msra.mxu0 0.0
        %874 = vmatprep.subr.mxu0 0.0
        %875 = vmatpush1.msra.mxu0 0.0
        %876 = vmatprep.subr.mxu0 0.0
        %877 = vmatpush1.msra.mxu0 0.0
        %878 = vmatprep.subr.mxu0 0.0
        %879 = vmatpush1.msra.mxu0 0.0
        %880 = vmatprep.subr.mxu0 0.0
        %881 = vmatpush1.msra.mxu0 0.0
        %882 = vmatprep.subr.mxu0 0.0
        %883 = vmatpush1.msra.mxu0 0.0
        %884 = vmatprep.subr.mxu0 0.0
        %885 = vmatpush1.msra.mxu0 0.0
        %886 = vmatprep.subr.mxu0 0.0
        %887 = vmatpush1.msra.mxu0 0.0
        %888 = vmatprep.subr.mxu0 0.0
        %889 = vmatpush1.msra.mxu0 0.0
        %890 = vmatprep.subr.mxu0 0.0
        %891 = vmatpush1.msra.mxu0 0.0
        %892 = vmatprep.subr.mxu0 0.0
        %893 = vmatpush1.msra.mxu0 0.0
        %894 = vmatprep.subr.mxu0 0.0
        %895 = vmatpush1.msra.mxu0 0.0
        %896 = vmatprep.subr.mxu0 0.0
        %897 = vmatpush1.msra.mxu0 0.0
        %898 = vmatprep.subr.mxu0 0.0
        %899 = vmatpush1.msra.mxu0 0.0
        %900 = vmatprep.subr.mxu0 0.0
        %901 = vmatpush1.msra.mxu0 0.0
        %902 = vmatprep.subr.mxu0 0.0
        %903 = vmatpush1.msra.mxu0 0.0
        %904 = vmatprep.subr.mxu0 0.0
        %905 = vmatpush1.msra.mxu0 0.0
        %906 = vmatprep.subr.mxu0 0.0
        %907 = vmatpush1.msra.mxu0 0.0
        %908 = vmatprep.subr.mxu0 0.0
        %909 = vmatpush1.msra.mxu0 0.0
        %910 = vmatprep.subr.mxu0 0.0
        %911 = vmatpush1.msra.mxu0 0.0
        %912 = vmatprep.subr.mxu0 0.0
        %913 = vmatpush1.msra.mxu0 0.0
        %914 = vmatprep.subr.mxu0 0.0
        %915 = vmatpush1.msra.mxu0 0.0
        %916 = vmatprep.subr.mxu0 0.0
        %917 = vmatpush1.msra.mxu0 0.0
        %918 = vmatprep.subr.mxu0 0.0
        %919 = vmatpush1.msra.mxu0 0.0
        %920 = vmatprep.subr.mxu0 0.0
        %921 = vmatpush1.msra.mxu0 0.0
        %922 = vmatprep.subr.mxu0 0.0
        %923 = vmatpush1.msra.mxu0 0.0
        %924 = vmatprep.mubr.f32.mxu0 0.0
        %925 = vmatmul.mubr.f32.gmra.mrb[0].mxu0 %v855
        %v926 = vpop.f32.mrb[0].mxu0
        %v927 = vadd.f32 0.0, %v926
        %v928 = vpop.f32.mrb[0].mxu0
        %929 = vmatprep.mubr.f32.mxu0 0.0
        %930 = vmatmul.mubr.f32.gmra.mrb[0].mxu0 %v858
        %v931 = vpop.f32.mrb[0].mxu0
        %v932 = vadd.f32 0.0, %v931
        %v933 = vpop.f32.mrb[0].mxu0
        %934 = vdwg.mxu0
        %v935 = vadd.f32 %v838, %v927
        %v936 = vadd.f32 %v843, %v932
        %s937 = scalar_lea.vmem %s4, 32
        %v938 = vld [vmem:[%s937] sm:$0xff]
        %v939 = vld [vmem:[%s937 + $0x8] sm:$0xff]
        %940 = vrot.lane.b32.xlu0 %v749, 127
        %v941 = vpop.permute.xlu0 %940
        %vm943 = vcmask 121856
        %v944 = vsel %vm943, %v941, 0.0
        %v946 = vsel %vm461, %v938, 0
        %v949 = vsel %vm461, %v939, 0
        %951 = vmatprep.subr.mxu0 0.0
        %952 = vmatpush1.msra.mxu0 %v944
        %953 = vmatprep.subr.mxu0 0.0
        %954 = vmatpush1.msra.mxu0 0.0
        %955 = vmatprep.subr.mxu0 0.0
        %956 = vmatpush1.msra.mxu0 0.0
        %957 = vmatprep.subr.mxu0 0.0
        %958 = vmatpush1.msra.mxu0 0.0
        %959 = vmatprep.subr.mxu0 0.0
        %960 = vmatpush1.msra.mxu0 0.0
        %961 = vmatprep.subr.mxu0 0.0
        %962 = vmatpush1.msra.mxu0 0.0
        %963 = vmatprep.subr.mxu0 0.0
        %964 = vmatpush1.msra.mxu0 0.0
        %965 = vmatprep.subr.mxu0 0.0
        %966 = vmatpush1.msra.mxu0 0.0
        %967 = vmatprep.subr.mxu0 0.0
        %968 = vmatpush1.msra.mxu0 0.0
        %969 = vmatprep.subr.mxu0 0.0
        %970 = vmatpush1.msra.mxu0 0.0
        %971 = vmatprep.subr.mxu0 0.0
        %972 = vmatpush1.msra.mxu0 0.0
        %973 = vmatprep.subr.mxu0 0.0
        %974 = vmatpush1.msra.mxu0 0.0
        %975 = vmatprep.subr.mxu0 0.0
        %976 = vmatpush1.msra.mxu0 0.0
        %977 = vmatprep.subr.mxu0 0.0
        %978 = vmatpush1.msra.mxu0 0.0
        %979 = vmatprep.subr.mxu0 0.0
        %980 = vmatpush1.msra.mxu0 0.0
        %981 = vmatprep.subr.mxu0 0.0
        %982 = vmatpush1.msra.mxu0 0.0
        %983 = vmatprep.subr.mxu0 0.0
        %984 = vmatpush1.msra.mxu0 0.0
        %985 = vmatprep.subr.mxu0 0.0
        %986 = vmatpush1.msra.mxu0 0.0
        %987 = vmatprep.subr.mxu0 0.0
        %988 = vmatpush1.msra.mxu0 0.0
        %989 = vmatprep.subr.mxu0 0.0
        %990 = vmatpush1.msra.mxu0 0.0
        %991 = vmatprep.subr.mxu0 0.0
        %992 = vmatpush1.msra.mxu0 0.0
        %993 = vmatprep.subr.mxu0 0.0
        %994 = vmatpush1.msra.mxu0 0.0
        %995 = vmatprep.subr.mxu0 0.0
        %996 = vmatpush1.msra.mxu0 0.0
        %997 = vmatprep.subr.mxu0 0.0
        %998 = vmatpush1.msra.mxu0 0.0
        %999 = vmatprep.subr.mxu0 0.0
        %1000 = vmatpush1.msra.mxu0 0.0
        %1001 = vmatprep.subr.mxu0 0.0
        %1002 = vmatpush1.msra.mxu0 0.0
        %1003 = vmatprep.subr.mxu0 0.0
        %1004 = vmatpush1.msra.mxu0 0.0
        %1005 = vmatprep.subr.mxu0 0.0
        %1006 = vmatpush1.msra.mxu0 0.0
        %1007 = vmatprep.subr.mxu0 0.0
        %1008 = vmatpush1.msra.mxu0 0.0
        %1009 = vmatprep.subr.mxu0 0.0
        %1010 = vmatpush1.msra.mxu0 0.0
        %1011 = vmatprep.subr.mxu0 0.0
        %1012 = vmatpush1.msra.mxu0 0.0
        %1013 = vmatprep.subr.mxu0 0.0
        %1014 = vmatpush1.msra.mxu0 0.0
        %1015 = vmatprep.mubr.f32.mxu0 0.0
        %1016 = vmatmul.mubr.f32.gmra.mrb[0].mxu0 %v946
        %v1017 = vpop.f32.mrb[0].mxu0
        %v1018 = vadd.f32 0.0, %v1017
        %v1019 = vpop.f32.mrb[0].mxu0
        %1020 = vmatprep.mubr.f32.mxu0 0.0
        %1021 = vmatmul.mubr.f32.gmra.mrb[0].mxu0 %v949
        %v1022 = vpop.f32.mrb[0].mxu0
        %v1023 = vadd.f32 0.0, %v1022
        %v1024 = vpop.f32.mrb[0].mxu0
        %1025 = vdwg.mxu0
        %v1026 = vadd.f32 %v935, %v1018
        %v1027 = vadd.f32 %v936, %v1023
        %s1028 = sld [smem:[#allocation2]]
        %vm1029 = vcmp.gt.f32.partialorder %v1026, 0.0
        %vm1030 = vcmp.gt.f32.partialorder %v1027, 0.0
        %v1031 = vstv %s1028
        %v1032 = vmul.f32 %v1031, %v1026
        %v1033 = vmul.f32 %v1031, %v1027
        %v1034 = vsel %vm1029, %v1026, %v1032
        %v1035 = vsel %vm1030, %v1027, %v1033
        %s1036 = scalar_lea.vmem %s6, 16
        %v1037 = vld [vmem:[%s1036] sm:$0xff]
        %v1038 = vld [vmem:[%s1036 + $0x8] sm:$0xff]
        %v1039 = vld [vmem:[%s7] sm:$0xff]
        %v1040 = vld [vmem:[%s7 + $0x8] sm:$0xff]
        %1042 = vset.pattern.permute.xlu0 0
        %1043 = vperm.xlu0 %1042, %v1039
        %v1044 = vpop.permute.xlu0 %1043
        %1047 = vset.pattern.permute.xlu0 0
        %1048 = vperm.xlu0 %1047, %v1040
        %v1049 = vpop.permute.xlu0 %1048
        %v1052 = vsel %vm723, %v1037, 0
        %v1055 = vsel %vm723, %v1038, 0
        %1057 = vmatprep.subr.mxu0 0.0
        %1058 = vmatpush1.msra.mxu0 %v1034
        %1059 = vmatprep.subr.mxu0 0.0
        %1060 = vmatpush1.msra.mxu0 %v1035
        %1061 = vmatprep.subr.mxu0 0.0
        %1062 = vmatpush1.msra.mxu0 0.0
        %1063 = vmatprep.subr.mxu0 0.0
        %1064 = vmatpush1.msra.mxu0 0.0
        %1065 = vmatprep.subr.mxu0 0.0
        %1066 = vmatpush1.msra.mxu0 0.0
        %1067 = vmatprep.subr.mxu0 0.0
        %1068 = vmatpush1.msra.mxu0 0.0
        %1069 = vmatprep.subr.mxu0 0.0
        %1070 = vmatpush1.msra.mxu0 0.0
        %1071 = vmatprep.subr.mxu0 0.0
        %1072 = vmatpush1.msra.mxu0 0.0
        %1073 = vmatprep.subr.mxu0 0.0
        %1074 = vmatpush1.msra.mxu0 0.0
        %1075 = vmatprep.subr.mxu0 0.0
        %1076 = vmatpush1.msra.mxu0 0.0
        %1077 = vmatprep.subr.mxu0 0.0
        %1078 = vmatpush1.msra.mxu0 0.0
        %1079 = vmatprep.subr.mxu0 0.0
        %1080 = vmatpush1.msra.mxu0 0.0
        %1081 = vmatprep.subr.mxu0 0.0
        %1082 = vmatpush1.msra.mxu0 0.0
        %1083 = vmatprep.subr.mxu0 0.0
        %1084 = vmatpush1.msra.mxu0 0.0
        %1085 = vmatprep.subr.mxu0 0.0
        %1086 = vmatpush1.msra.mxu0 0.0
        %1087 = vmatprep.subr.mxu0 0.0
        %1088 = vmatpush1.msra.mxu0 0.0
        %1089 = vmatprep.subr.mxu0 0.0
        %1090 = vmatpush1.msra.mxu0 0.0
        %1091 = vmatprep.subr.mxu0 0.0
        %1092 = vmatpush1.msra.mxu0 0.0
        %1093 = vmatprep.subr.mxu0 0.0
        %1094 = vmatpush1.msra.mxu0 0.0
        %1095 = vmatprep.subr.mxu0 0.0
        %1096 = vmatpush1.msra.mxu0 0.0
        %1097 = vmatprep.subr.mxu0 0.0
        %1098 = vmatpush1.msra.mxu0 0.0
        %1099 = vmatprep.subr.mxu0 0.0
        %1100 = vmatpush1.msra.mxu0 0.0
        %1101 = vmatprep.subr.mxu0 0.0
        %1102 = vmatpush1.msra.mxu0 0.0
        %1103 = vmatprep.subr.mxu0 0.0
        %1104 = vmatpush1.msra.mxu0 0.0
        %1105 = vmatprep.subr.mxu0 0.0
        %1106 = vmatpush1.msra.mxu0 0.0
        %1107 = vmatprep.subr.mxu0 0.0
        %1108 = vmatpush1.msra.mxu0 0.0
        %1109 = vmatprep.subr.mxu0 0.0
        %1110 = vmatpush1.msra.mxu0 0.0
        %1111 = vmatprep.subr.mxu0 0.0
        %1112 = vmatpush1.msra.mxu0 0.0
        %1113 = vmatprep.subr.mxu0 0.0
        %1114 = vmatpush1.msra.mxu0 0.0
        %1115 = vmatprep.subr.mxu0 0.0
        %1116 = vmatpush1.msra.mxu0 0.0
        %1117 = vmatprep.subr.mxu0 0.0
        %1118 = vmatpush1.msra.mxu0 0.0
        %1119 = vmatprep.subr.mxu0 0.0
        %1120 = vmatpush1.msra.mxu0 0.0
        %1121 = vmatprep.mubr.f32.mxu0 0.0
        %1122 = vmatmul.mubr.f32.gmra.mrb[0].mxu0 %v1052
        %v1123 = vpop.f32.mrb[0].mxu0
        %v1124 = vadd.f32 %v1044, %v1123
        %v1125 = vpop.f32.mrb[0].mxu0
        %1126 = vmatprep.mubr.f32.mxu0 0.0
        %1127 = vmatmul.mubr.f32.gmra.mrb[0].mxu0 %v1055
        %v1128 = vpop.f32.mrb[0].mxu0
        %v1129 = vadd.f32 %v1049, %v1128
        %v1130 = vpop.f32.mrb[0].mxu0
        %1131 = vdwg.mxu0
        %v1132 = vld [vmem:[%s6] sm:$0xff]
        %v1133 = vld [vmem:[%s6 + $0x8] sm:$0xff]
        %1136 = vrot.lane.b32.xlu0 %v1034, 1
        %v1137 = vpop.permute.xlu0 %1136
        %1138 = vrot.lane.b32.xlu0 %v1035, 1
        %v1139 = vpop.permute.xlu0 %1138
        %v1142 = vsel %vm852, 0.0, %v1137
        %v1143 = vsel %vm852, 0.0, %v1139
        %v1145 = vsel %vm723, %v1132, 0
        %v1148 = vsel %vm723, %v1133, 0
        %1150 = vmatprep.subr.mxu0 0.0
        %1151 = vmatpush1.msra.mxu0 %v1142
        %1152 = vmatprep.subr.mxu0 0.0
        %1153 = vmatpush1.msra.mxu0 %v1143
        %1154 = vmatprep.subr.mxu0 0.0
        %1155 = vmatpush1.msra.mxu0 0.0
        %1156 = vmatprep.subr.mxu0 0.0
        %1157 = vmatpush1.msra.mxu0 0.0
        %1158 = vmatprep.subr.mxu0 0.0
        %1159 = vmatpush1.msra.mxu0 0.0
        %1160 = vmatprep.subr.mxu0 0.0
        %1161 = vmatpush1.msra.mxu0 0.0
        %1162 = vmatprep.subr.mxu0 0.0
        %1163 = vmatpush1.msra.mxu0 0.0
        %1164 = vmatprep.subr.mxu0 0.0
        %1165 = vmatpush1.msra.mxu0 0.0
        %1166 = vmatprep.subr.mxu0 0.0
        %1167 = vmatpush1.msra.mxu0 0.0
        %1168 = vmatprep.subr.mxu0 0.0
        %1169 = vmatpush1.msra.mxu0 0.0
        %1170 = vmatprep.subr.mxu0 0.0
        %1171 = vmatpush1.msra.mxu0 0.0
        %1172 = vmatprep.subr.mxu0 0.0
        %1173 = vmatpush1.msra.mxu0 0.0
        %1174 = vmatprep.subr.mxu0 0.0
        %1175 = vmatpush1.msra.mxu0 0.0
        %1176 = vmatprep.subr.mxu0 0.0
        %1177 = vmatpush1.msra.mxu0 0.0
        %1178 = vmatprep.subr.mxu0 0.0
        %1179 = vmatpush1.msra.mxu0 0.0
        %1180 = vmatprep.subr.mxu0 0.0
        %1181 = vmatpush1.msra.mxu0 0.0
        %1182 = vmatprep.subr.mxu0 0.0
        %1183 = vmatpush1.msra.mxu0 0.0
        %1184 = vmatprep.subr.mxu0 0.0
        %1185 = vmatpush1.msra.mxu0 0.0
        %1186 = vmatprep.subr.mxu0 0.0
        %1187 = vmatpush1.msra.mxu0 0.0
        %1188 = vmatprep.subr.mxu0 0.0
        %1189 = vmatpush1.msra.mxu0 0.0
        %1190 = vmatprep.subr.mxu0 0.0
        %1191 = vmatpush1.msra.mxu0 0.0
        %1192 = vmatprep.subr.mxu0 0.0
        %1193 = vmatpush1.msra.mxu0 0.0
        %1194 = vmatprep.subr.mxu0 0.0
        %1195 = vmatpush1.msra.mxu0 0.0
        %1196 = vmatprep.subr.mxu0 0.0
        %1197 = vmatpush1.msra.mxu0 0.0
        %1198 = vmatprep.subr.mxu0 0.0
        %1199 = vmatpush1.msra.mxu0 0.0
        %1200 = vmatprep.subr.mxu0 0.0
        %1201 = vmatpush1.msra.mxu0 0.0
        %1202 = vmatprep.subr.mxu0 0.0
        %1203 = vmatpush1.msra.mxu0 0.0
        %1204 = vmatprep.subr.mxu0 0.0
        %1205 = vmatpush1.msra.mxu0 0.0
        %1206 = vmatprep.subr.mxu0 0.0
        %1207 = vmatpush1.msra.mxu0 0.0
        %1208 = vmatprep.subr.mxu0 0.0
        %1209 = vmatpush1.msra.mxu0 0.0
        %1210 = vmatprep.subr.mxu0 0.0
        %1211 = vmatpush1.msra.mxu0 0.0
        %1212 = vmatprep.subr.mxu0 0.0
        %1213 = vmatpush1.msra.mxu0 0.0
        %1214 = vmatprep.mubr.f32.mxu0 0.0
        %1215 = vmatmul.mubr.f32.gmra.mrb[0].mxu0 %v1145
        %v1216 = vpop.f32.mrb[0].mxu0
        %v1217 = vadd.f32 0.0, %v1216
        %v1218 = vpop.f32.mrb[0].mxu0
        %1219 = vmatprep.mubr.f32.mxu0 0.0
        %1220 = vmatmul.mubr.f32.gmra.mrb[0].mxu0 %v1148
        %v1221 = vpop.f32.mrb[0].mxu0
        %v1222 = vadd.f32 0.0, %v1221
        %v1223 = vpop.f32.mrb[0].mxu0
        %1224 = vdwg.mxu0
        %v1225 = vadd.f32 %v1124, %v1217
        %v1226 = vadd.f32 %v1129, %v1222
        %s1227 = scalar_lea.vmem %s6, 32
        %v1228 = vld [vmem:[%s1227] sm:$0xff]
        %v1229 = vld [vmem:[%s1227 + $0x8] sm:$0xff]
        %1230 = vrot.lane.b32.xlu0 %v1034, 127
        %v1231 = vpop.permute.xlu0 %1230
        %1232 = vrot.lane.b32.xlu0 %v1035, 127
        %v1233 = vpop.permute.xlu0 %1232
        %v1236 = vsel %vm943, %v1231, 0.0
        %v1237 = vsel %vm943, %v1233, 0.0
        %v1239 = vsel %vm723, %v1228, 0
        %v1242 = vsel %vm723, %v1229, 0
        %1244 = vmatprep.subr.mxu0 0.0
        %1245 = vmatpush1.msra.mxu0 %v1236
        %1246 = vmatprep.subr.mxu0 0.0
        %1247 = vmatpush1.msra.mxu0 %v1237
        %1248 = vmatprep.subr.mxu0 0.0
        %1249 = vmatpush1.msra.mxu0 0.0
        %1250 = vmatprep.subr.mxu0 0.0
        %1251 = vmatpush1.msra.mxu0 0.0
        %1252 = vmatprep.subr.mxu0 0.0
        %1253 = vmatpush1.msra.mxu0 0.0
        %1254 = vmatprep.subr.mxu0 0.0
        %1255 = vmatpush1.msra.mxu0 0.0
        %1256 = vmatprep.subr.mxu0 0.0
        %1257 = vmatpush1.msra.mxu0 0.0
        %1258 = vmatprep.subr.mxu0 0.0
        %1259 = vmatpush1.msra.mxu0 0.0
        %1260 = vmatprep.subr.mxu0 0.0
        %1261 = vmatpush1.msra.mxu0 0.0
        %1262 = vmatprep.subr.mxu0 0.0
        %1263 = vmatpush1.msra.mxu0 0.0
        %1264 = vmatprep.subr.mxu0 0.0
        %1265 = vmatpush1.msra.mxu0 0.0
        %1266 = vmatprep.subr.mxu0 0.0
        %1267 = vmatpush1.msra.mxu0 0.0
        %1268 = vmatprep.subr.mxu0 0.0
        %1269 = vmatpush1.msra.mxu0 0.0
        %1270 = vmatprep.subr.mxu0 0.0
        %1271 = vmatpush1.msra.mxu0 0.0
        %1272 = vmatprep.subr.mxu0 0.0
        %1273 = vmatpush1.msra.mxu0 0.0
        %1274 = vmatprep.subr.mxu0 0.0
        %1275 = vmatpush1.msra.mxu0 0.0
        %1276 = vmatprep.subr.mxu0 0.0
        %1277 = vmatpush1.msra.mxu0 0.0
        %1278 = vmatprep.subr.mxu0 0.0
        %1279 = vmatpush1.msra.mxu0 0.0
        %1280 = vmatprep.subr.mxu0 0.0
        %1281 = vmatpush1.msra.mxu0 0.0
        %1282 = vmatprep.subr.mxu0 0.0
        %1283 = vmatpush1.msra.mxu0 0.0
        %1284 = vmatprep.subr.mxu0 0.0
        %1285 = vmatpush1.msra.mxu0 0.0
        %1286 = vmatprep.subr.mxu0 0.0
        %1287 = vmatpush1.msra.mxu0 0.0
        %1288 = vmatprep.subr.mxu0 0.0
        %1289 = vmatpush1.msra.mxu0 0.0
        %1290 = vmatprep.subr.mxu0 0.0
        %1291 = vmatpush1.msra.mxu0 0.0
        %1292 = vmatprep.subr.mxu0 0.0
        %1293 = vmatpush1.msra.mxu0 0.0
        %1294 = vmatprep.subr.mxu0 0.0
        %1295 = vmatpush1.msra.mxu0 0.0
        %1296 = vmatprep.subr.mxu0 0.0
        %1297 = vmatpush1.msra.mxu0 0.0
        %1298 = vmatprep.subr.mxu0 0.0
        %1299 = vmatpush1.msra.mxu0 0.0
        %1300 = vmatprep.subr.mxu0 0.0
        %1301 = vmatpush1.msra.mxu0 0.0
        %1302 = vmatprep.subr.mxu0 0.0
        %1303 = vmatpush1.msra.mxu0 0.0
        %1304 = vmatprep.subr.mxu0 0.0
        %1305 = vmatpush1.msra.mxu0 0.0
        %1306 = vmatprep.subr.mxu0 0.0
        %1307 = vmatpush1.msra.mxu0 0.0
        %1308 = vmatprep.mubr.f32.mxu0 0.0
        %1309 = vmatmul.mubr.f32.gmra.mrb[0].mxu0 %v1239
        %v1310 = vpop.f32.mrb[0].mxu0
        %v1311 = vadd.f32 0.0, %v1310
        %v1312 = vpop.f32.mrb[0].mxu0
        %1313 = vmatprep.mubr.f32.mxu0 0.0
        %1314 = vmatmul.mubr.f32.gmra.mrb[0].mxu0 %v1242
        %v1315 = vpop.f32.mrb[0].mxu0
        %v1316 = vadd.f32 0.0, %v1315
        %v1317 = vpop.f32.mrb[0].mxu0
        %1318 = vdwg.mxu0
        %v1319 = vadd.f32 %v1225, %v1311
        %v1320 = vadd.f32 %v1226, %v1316
        %v1321 = vadd.f32 %v1026, %v1319
        %v1322 = vadd.f32 %v1027, %v1320
        %s1323 = sld [smem:[#allocation2 + $0x1]]
        %vm1324 = vcmp.gt.f32.partialorder %v1321, 0.0
        %vm1325 = vcmp.gt.f32.partialorder %v1322, 0.0
        %v1326 = vstv %s1323
        %v1327 = vmul.f32 %v1326, %v1321
        %v1328 = vmul.f32 %v1326, %v1322
        %v1329 = vsel %vm1324, %v1321, %v1327
        %v1330 = vsel %vm1325, %v1322, %v1328
        %s1331 = scalar_lea.vmem %s8, 16
        %v1332 = vld [vmem:[%s1331] sm:$0xff]
        %v1333 = vld [vmem:[%s1331 + $0x8] sm:$0xff]
        %v1334 = vld [vmem:[%s9] sm:$0xff]
        %v1335 = vld [vmem:[%s9 + $0x8] sm:$0xff]
        %1337 = vset.pattern.permute.xlu0 0
        %1338 = vperm.xlu0 %1337, %v1334
        %v1339 = vpop.permute.xlu0 %1338
        %1342 = vset.pattern.permute.xlu0 0
        %1343 = vperm.xlu0 %1342, %v1335
        %v1344 = vpop.permute.xlu0 %1343
        %v1347 = vsel %vm723, %v1332, 0
        %v1350 = vsel %vm723, %v1333, 0
        %1352 = vmatprep.subr.mxu0 0.0
        %1353 = vmatpush1.msra.mxu0 %v1329
        %1354 = vmatprep.subr.mxu0 0.0
        %1355 = vmatpush1.msra.mxu0 %v1330
        %1356 = vmatprep.subr.mxu0 0.0
        %1357 = vmatpush1.msra.mxu0 0.0
        %1358 = vmatprep.subr.mxu0 0.0
        %1359 = vmatpush1.msra.mxu0 0.0
        %1360 = vmatprep.subr.mxu0 0.0
        %1361 = vmatpush1.msra.mxu0 0.0
        %1362 = vmatprep.subr.mxu0 0.0
        %1363 = vmatpush1.msra.mxu0 0.0
        %1364 = vmatprep.subr.mxu0 0.0
        %1365 = vmatpush1.msra.mxu0 0.0
        %1366 = vmatprep.subr.mxu0 0.0
        %1367 = vmatpush1.msra.mxu0 0.0
        %1368 = vmatprep.subr.mxu0 0.0
        %1369 = vmatpush1.msra.mxu0 0.0
        %1370 = vmatprep.subr.mxu0 0.0
        %1371 = vmatpush1.msra.mxu0 0.0
        %1372 = vmatprep.subr.mxu0 0.0
        %1373 = vmatpush1.msra.mxu0 0.0
        %1374 = vmatprep.subr.mxu0 0.0
        %1375 = vmatpush1.msra.mxu0 0.0
        %1376 = vmatprep.subr.mxu0 0.0
        %1377 = vmatpush1.msra.mxu0 0.0
        %1378 = vmatprep.subr.mxu0 0.0
        %1379 = vmatpush1.msra.mxu0 0.0
        %1380 = vmatprep.subr.mxu0 0.0
        %1381 = vmatpush1.msra.mxu0 0.0
        %1382 = vmatprep.subr.mxu0 0.0
        %1383 = vmatpush1.msra.mxu0 0.0
        %1384 = vmatprep.subr.mxu0 0.0
        %1385 = vmatpush1.msra.mxu0 0.0
        %1386 = vmatprep.subr.mxu0 0.0
        %1387 = vmatpush1.msra.mxu0 0.0
        %1388 = vmatprep.subr.mxu0 0.0
        %1389 = vmatpush1.msra.mxu0 0.0
        %1390 = vmatprep.subr.mxu0 0.0
        %1391 = vmatpush1.msra.mxu0 0.0
        %1392 = vmatprep.subr.mxu0 0.0
        %1393 = vmatpush1.msra.mxu0 0.0
        %1394 = vmatprep.subr.mxu0 0.0
        %1395 = vmatpush1.msra.mxu0 0.0
        %1396 = vmatprep.subr.mxu0 0.0
        %1397 = vmatpush1.msra.mxu0 0.0
        %1398 = vmatprep.subr.mxu0 0.0
        %1399 = vmatpush1.msra.mxu0 0.0
        %1400 = vmatprep.subr.mxu0 0.0
        %1401 = vmatpush1.msra.mxu0 0.0
        %1402 = vmatprep.subr.mxu0 0.0
        %1403 = vmatpush1.msra.mxu0 0.0
        %1404 = vmatprep.subr.mxu0 0.0
        %1405 = vmatpush1.msra.mxu0 0.0
        %1406 = vmatprep.subr.mxu0 0.0
        %1407 = vmatpush1.msra.mxu0 0.0
        %1408 = vmatprep.subr.mxu0 0.0
        %1409 = vmatpush1.msra.mxu0 0.0
        %1410 = vmatprep.subr.mxu0 0.0
        %1411 = vmatpush1.msra.mxu0 0.0
        %1412 = vmatprep.subr.mxu0 0.0
        %1413 = vmatpush1.msra.mxu0 0.0
        %1414 = vmatprep.subr.mxu0 0.0
        %1415 = vmatpush1.msra.mxu0 0.0
        %1416 = vmatprep.mubr.f32.mxu0 0.0
        %1417 = vmatmul.mubr.f32.gmra.mrb[0].mxu0 %v1347
        %v1418 = vpop.f32.mrb[0].mxu0
        %v1419 = vadd.f32 %v1339, %v1418
        %v1420 = vpop.f32.mrb[0].mxu0
        %1421 = vmatprep.mubr.f32.mxu0 0.0
        %1422 = vmatmul.mubr.f32.gmra.mrb[0].mxu0 %v1350
        %v1423 = vpop.f32.mrb[0].mxu0
        %v1424 = vadd.f32 %v1344, %v1423
        %v1425 = vpop.f32.mrb[0].mxu0
        %1426 = vdwg.mxu0
        %v1427 = vld [vmem:[%s8] sm:$0xff]
        %v1428 = vld [vmem:[%s8 + $0x8] sm:$0xff]
        %1431 = vrot.lane.b32.xlu0 %v1329, 2
        %v1432 = vpop.permute.xlu0 %1431
        %1433 = vrot.lane.b32.xlu0 %v1330, 2
        %v1434 = vpop.permute.xlu0 %1433
        %vm1437 = vcmask 15360
        %v1438 = vsel %vm1437, 0.0, %v1432
        %v1439 = vsel %vm1437, 0.0, %v1434
        %v1441 = vsel %vm723, %v1427, 0
        %v1444 = vsel %vm723, %v1428, 0
        %1446 = vmatprep.subr.mxu0 0.0
        %1447 = vmatpush1.msra.mxu0 %v1438
        %1448 = vmatprep.subr.mxu0 0.0
        %1449 = vmatpush1.msra.mxu0 %v1439
        %1450 = vmatprep.subr.mxu0 0.0
        %1451 = vmatpush1.msra.mxu0 0.0
        %1452 = vmatprep.subr.mxu0 0.0
        %1453 = vmatpush1.msra.mxu0 0.0
        %1454 = vmatprep.subr.mxu0 0.0
        %1455 = vmatpush1.msra.mxu0 0.0
        %1456 = vmatprep.subr.mxu0 0.0
        %1457 = vmatpush1.msra.mxu0 0.0
        %1458 = vmatprep.subr.mxu0 0.0
        %1459 = vmatpush1.msra.mxu0 0.0
        %1460 = vmatprep.subr.mxu0 0.0
        %1461 = vmatpush1.msra.mxu0 0.0
        %1462 = vmatprep.subr.mxu0 0.0
        %1463 = vmatpush1.msra.mxu0 0.0
        %1464 = vmatprep.subr.mxu0 0.0
        %1465 = vmatpush1.msra.mxu0 0.0
        %1466 = vmatprep.subr.mxu0 0.0
        %1467 = vmatpush1.msra.mxu0 0.0
        %1468 = vmatprep.subr.mxu0 0.0
        %1469 = vmatpush1.msra.mxu0 0.0
        %1470 = vmatprep.subr.mxu0 0.0
        %1471 = vmatpush1.msra.mxu0 0.0
        %1472 = vmatprep.subr.mxu0 0.0
        %1473 = vmatpush1.msra.mxu0 0.0
        %1474 = vmatprep.subr.mxu0 0.0
        %1475 = vmatpush1.msra.mxu0 0.0
        %1476 = vmatprep.subr.mxu0 0.0
        %1477 = vmatpush1.msra.mxu0 0.0
        %1478 = vmatprep.subr.mxu0 0.0
        %1479 = vmatpush1.msra.mxu0 0.0
        %1480 = vmatprep.subr.mxu0 0.0
        %1481 = vmatpush1.msra.mxu0 0.0
        %1482 = vmatprep.subr.mxu0 0.0
        %1483 = vmatpush1.msra.mxu0 0.0
        %1484 = vmatprep.subr.mxu0 0.0
        %1485 = vmatpush1.msra.mxu0 0.0
        %1486 = vmatprep.subr.mxu0 0.0
        %1487 = vmatpush1.msra.mxu0 0.0
        %1488 = vmatprep.subr.mxu0 0.0
        %1489 = vmatpush1.msra.mxu0 0.0
        %1490 = vmatprep.subr.mxu0 0.0
        %1491 = vmatpush1.msra.mxu0 0.0
        %1492 = vmatprep.subr.mxu0 0.0
        %1493 = vmatpush1.msra.mxu0 0.0
        %1494 = vmatprep.subr.mxu0 0.0
        %1495 = vmatpush1.msra.mxu0 0.0
        %1496 = vmatprep.subr.mxu0 0.0
        %1497 = vmatpush1.msra.mxu0 0.0
        %1498 = vmatprep.subr.mxu0 0.0
        %1499 = vmatpush1.msra.mxu0 0.0
        %1500 = vmatprep.subr.mxu0 0.0
        %1501 = vmatpush1.msra.mxu0 0.0
        %1502 = vmatprep.subr.mxu0 0.0
        %1503 = vmatpush1.msra.mxu0 0.0
        %1504 = vmatprep.subr.mxu0 0.0
        %1505 = vmatpush1.msra.mxu0 0.0
        %1506 = vmatprep.subr.mxu0 0.0
        %1507 = vmatpush1.msra.mxu0 0.0
        %1508 = vmatprep.subr.mxu0 0.0
        %1509 = vmatpush1.msra.mxu0 0.0
        %1510 = vmatprep.mubr.f32.mxu0 0.0
        %1511 = vmatmul.mubr.f32.gmra.mrb[0].mxu0 %v1441
        %v1512 = vpop.f32.mrb[0].mxu0
        %v1513 = vadd.f32 0.0, %v1512
        %v1514 = vpop.f32.mrb[0].mxu0
        %1515 = vmatprep.mubr.f32.mxu0 0.0
        %1516 = vmatmul.mubr.f32.gmra.mrb[0].mxu0 %v1444
        %v1517 = vpop.f32.mrb[0].mxu0
        %v1518 = vadd.f32 0.0, %v1517
        %v1519 = vpop.f32.mrb[0].mxu0
        %1520 = vdwg.mxu0
        %v1521 = vadd.f32 %v1419, %v1513
        %v1522 = vadd.f32 %v1424, %v1518
        %s1523 = scalar_lea.vmem %s8, 32
        %v1524 = vld [vmem:[%s1523] sm:$0xff]
        %v1525 = vld [vmem:[%s1523 + $0x8] sm:$0xff]
        %1526 = vrot.lane.b32.xlu0 %v1329, 126
        %v1527 = vpop.permute.xlu0 %1526
        %1528 = vrot.lane.b32.xlu0 %v1330, 126
        %v1529 = vpop.permute.xlu0 %1528
        %vm1532 = vcmask 113664
        %v1533 = vsel %vm1532, %v1527, 0.0
        %v1534 = vsel %vm1532, %v1529, 0.0
        %v1536 = vsel %vm723, %v1524, 0
        %v1539 = vsel %vm723, %v1525, 0
        %1541 = vmatprep.subr.mxu0 0.0
        %1542 = vmatpush1.msra.mxu0 %v1533
        %1543 = vmatprep.subr.mxu0 0.0
        %1544 = vmatpush1.msra.mxu0 %v1534
        %1545 = vmatprep.subr.mxu0 0.0
        %1546 = vmatpush1.msra.mxu0 0.0
        %1547 = vmatprep.subr.mxu0 0.0
        %1548 = vmatpush1.msra.mxu0 0.0
        %1549 = vmatprep.subr.mxu0 0.0
        %1550 = vmatpush1.msra.mxu0 0.0
        %1551 = vmatprep.subr.mxu0 0.0
        %1552 = vmatpush1.msra.mxu0 0.0
        %1553 = vmatprep.subr.mxu0 0.0
        %1554 = vmatpush1.msra.mxu0 0.0
        %1555 = vmatprep.subr.mxu0 0.0
        %1556 = vmatpush1.msra.mxu0 0.0
        %1557 = vmatprep.subr.mxu0 0.0
        %1558 = vmatpush1.msra.mxu0 0.0
        %1559 = vmatprep.subr.mxu0 0.0
        %1560 = vmatpush1.msra.mxu0 0.0
        %1561 = vmatprep.subr.mxu0 0.0
        %1562 = vmatpush1.msra.mxu0 0.0
        %1563 = vmatprep.subr.mxu0 0.0
        %1564 = vmatpush1.msra.mxu0 0.0
        %1565 = vmatprep.subr.mxu0 0.0
        %1566 = vmatpush1.msra.mxu0 0.0
        %1567 = vmatprep.subr.mxu0 0.0
        %1568 = vmatpush1.msra.mxu0 0.0
        %1569 = vmatprep.subr.mxu0 0.0
        %1570 = vmatpush1.msra.mxu0 0.0
        %1571 = vmatprep.subr.mxu0 0.0
        %1572 = vmatpush1.msra.mxu0 0.0
        %1573 = vmatprep.subr.mxu0 0.0
        %1574 = vmatpush1.msra.mxu0 0.0
        %1575 = vmatprep.subr.mxu0 0.0
        %1576 = vmatpush1.msra.mxu0 0.0
        %1577 = vmatprep.subr.mxu0 0.0
        %1578 = vmatpush1.msra.mxu0 0.0
        %1579 = vmatprep.subr.mxu0 0.0
        %1580 = vmatpush1.msra.mxu0 0.0
        %1581 = vmatprep.subr.mxu0 0.0
        %1582 = vmatpush1.msra.mxu0 0.0
        %1583 = vmatprep.subr.mxu0 0.0
        %1584 = vmatpush1.msra.mxu0 0.0
        %1585 = vmatprep.subr.mxu0 0.0
        %1586 = vmatpush1.msra.mxu0 0.0
        %1587 = vmatprep.subr.mxu0 0.0
        %1588 = vmatpush1.msra.mxu0 0.0
        %1589 = vmatprep.subr.mxu0 0.0
        %1590 = vmatpush1.msra.mxu0 0.0
        %1591 = vmatprep.subr.mxu0 0.0
        %1592 = vmatpush1.msra.mxu0 0.0
        %1593 = vmatprep.subr.mxu0 0.0
        %1594 = vmatpush1.msra.mxu0 0.0
        %1595 = vmatprep.subr.mxu0 0.0
        %1596 = vmatpush1.msra.mxu0 0.0
        %1597 = vmatprep.subr.mxu0 0.0
        %1598 = vmatpush1.msra.mxu0 0.0
        %1599 = vmatprep.subr.mxu0 0.0
        %1600 = vmatpush1.msra.mxu0 0.0
        %1601 = vmatprep.subr.mxu0 0.0
        %1602 = vmatpush1.msra.mxu0 0.0
        %1603 = vmatprep.subr.mxu0 0.0
        %1604 = vmatpush1.msra.mxu0 0.0
        %1605 = vmatprep.mubr.f32.mxu0 0.0
        %1606 = vmatmul.mubr.f32.gmra.mrb[0].mxu0 %v1536
        %v1607 = vpop.f32.mrb[0].mxu0
        %v1608 = vadd.f32 0.0, %v1607
        %v1609 = vpop.f32.mrb[0].mxu0
        %1610 = vmatprep.mubr.f32.mxu0 0.0
        %1611 = vmatmul.mubr.f32.gmra.mrb[0].mxu0 %v1539
        %v1612 = vpop.f32.mrb[0].mxu0
        %v1613 = vadd.f32 0.0, %v1612
        %v1614 = vpop.f32.mrb[0].mxu0
        %1615 = vdwg.mxu0
        %v1616 = vadd.f32 %v1521, %v1608
        %v1617 = vadd.f32 %v1522, %v1613
        %v1618 = vadd.f32 %v1321, %v1616
        %v1619 = vadd.f32 %v1322, %v1617
        %s1620 = sld [smem:[#allocation2 + $0x2]]
        %vm1621 = vcmp.gt.f32.partialorder %v1618, 0.0
        %vm1622 = vcmp.gt.f32.partialorder %v1619, 0.0
        %v1623 = vstv %s1620
        %v1624 = vmul.f32 %v1623, %v1618
        %v1625 = vmul.f32 %v1623, %v1619
        %v1626 = vsel %vm1621, %v1618, %v1624
        %v1627 = vsel %vm1622, %v1619, %v1625
        %s1628 = scalar_lea.vmem %s10, 16
        %v1629 = vld [vmem:[%s1628] sm:$0xff]
        %v1630 = vld [vmem:[%s1628 + $0x8] sm:$0xff]
        %v1631 = vld [vmem:[%s11] sm:$0xff]
        %v1632 = vld [vmem:[%s11 + $0x8] sm:$0xff]
        %1634 = vset.pattern.permute.xlu0 0
        %1635 = vperm.xlu0 %1634, %v1631
        %v1636 = vpop.permute.xlu0 %1635
        %1639 = vset.pattern.permute.xlu0 0
        %1640 = vperm.xlu0 %1639, %v1632
        %v1641 = vpop.permute.xlu0 %1640
        %v1644 = vsel %vm723, %v1629, 0
        %v1647 = vsel %vm723, %v1630, 0
        %1649 = vmatprep.subr.mxu0 0.0
        %1650 = vmatpush1.msra.mxu0 %v1626
        %1651 = vmatprep.subr.mxu0 0.0
        %1652 = vmatpush1.msra.mxu0 %v1627
        %1653 = vmatprep.subr.mxu0 0.0
        %1654 = vmatpush1.msra.mxu0 0.0
        %1655 = vmatprep.subr.mxu0 0.0
        %1656 = vmatpush1.msra.mxu0 0.0
        %1657 = vmatprep.subr.mxu0 0.0
        %1658 = vmatpush1.msra.mxu0 0.0
        %1659 = vmatprep.subr.mxu0 0.0
        %1660 = vmatpush1.msra.mxu0 0.0
        %1661 = vmatprep.subr.mxu0 0.0
        %1662 = vmatpush1.msra.mxu0 0.0
        %1663 = vmatprep.subr.mxu0 0.0
        %1664 = vmatpush1.msra.mxu0 0.0
        %1665 = vmatprep.subr.mxu0 0.0
        %1666 = vmatpush1.msra.mxu0 0.0
        %1667 = vmatprep.subr.mxu0 0.0
        %1668 = vmatpush1.msra.mxu0 0.0
        %1669 = vmatprep.subr.mxu0 0.0
        %1670 = vmatpush1.msra.mxu0 0.0
        %1671 = vmatprep.subr.mxu0 0.0
        %1672 = vmatpush1.msra.mxu0 0.0
        %1673 = vmatprep.subr.mxu0 0.0
        %1674 = vmatpush1.msra.mxu0 0.0
        %1675 = vmatprep.subr.mxu0 0.0
        %1676 = vmatpush1.msra.mxu0 0.0
        %1677 = vmatprep.subr.mxu0 0.0
        %1678 = vmatpush1.msra.mxu0 0.0
        %1679 = vmatprep.subr.mxu0 0.0
        %1680 = vmatpush1.msra.mxu0 0.0
        %1681 = vmatprep.subr.mxu0 0.0
        %1682 = vmatpush1.msra.mxu0 0.0
        %1683 = vmatprep.subr.mxu0 0.0
        %1684 = vmatpush1.msra.mxu0 0.0
        %1685 = vmatprep.subr.mxu0 0.0
        %1686 = vmatpush1.msra.mxu0 0.0
        %1687 = vmatprep.subr.mxu0 0.0
        %1688 = vmatpush1.msra.mxu0 0.0
        %1689 = vmatprep.subr.mxu0 0.0
        %1690 = vmatpush1.msra.mxu0 0.0
        %1691 = vmatprep.subr.mxu0 0.0
        %1692 = vmatpush1.msra.mxu0 0.0
        %1693 = vmatprep.subr.mxu0 0.0
        %1694 = vmatpush1.msra.mxu0 0.0
        %1695 = vmatprep.subr.mxu0 0.0
        %1696 = vmatpush1.msra.mxu0 0.0
        %1697 = vmatprep.subr.mxu0 0.0
        %1698 = vmatpush1.msra.mxu0 0.0
        %1699 = vmatprep.subr.mxu0 0.0
        %1700 = vmatpush1.msra.mxu0 0.0
        %1701 = vmatprep.subr.mxu0 0.0
        %1702 = vmatpush1.msra.mxu0 0.0
        %1703 = vmatprep.subr.mxu0 0.0
        %1704 = vmatpush1.msra.mxu0 0.0
        %1705 = vmatprep.subr.mxu0 0.0
        %1706 = vmatpush1.msra.mxu0 0.0
        %1707 = vmatprep.subr.mxu0 0.0
        %1708 = vmatpush1.msra.mxu0 0.0
        %1709 = vmatprep.subr.mxu0 0.0
        %1710 = vmatpush1.msra.mxu0 0.0
        %1711 = vmatprep.subr.mxu0 0.0
        %1712 = vmatpush1.msra.mxu0 0.0
        %1713 = vmatprep.mubr.f32.mxu0 0.0
        %1714 = vmatmul.mubr.f32.gmra.mrb[0].mxu0 %v1644
        %v1715 = vpop.f32.mrb[0].mxu0
        %v1716 = vadd.f32 %v1636, %v1715
        %v1717 = vpop.f32.mrb[0].mxu0
        %1718 = vmatprep.mubr.f32.mxu0 0.0
        %1719 = vmatmul.mubr.f32.gmra.mrb[0].mxu0 %v1647
        %v1720 = vpop.f32.mrb[0].mxu0
        %v1721 = vadd.f32 %v1641, %v1720
        %v1722 = vpop.f32.mrb[0].mxu0
        %1723 = vdwg.mxu0
        %v1724 = vld [vmem:[%s10] sm:$0xff]
        %v1725 = vld [vmem:[%s10 + $0x8] sm:$0xff]
        %1728 = vrot.lane.b32.xlu0 %v1626, 4
        %v1729 = vpop.permute.xlu0 %1728
        %1730 = vrot.lane.b32.xlu0 %v1627, 4
        %v1731 = vpop.permute.xlu0 %1730
        %vm1734 = vcmask 31744
        %v1735 = vsel %vm1734, 0.0, %v1729
        %v1736 = vsel %vm1734, 0.0, %v1731
        %v1738 = vsel %vm723, %v1724, 0
        %v1741 = vsel %vm723, %v1725, 0
        %1743 = vmatprep.subr.mxu0 0.0
        %1744 = vmatpush1.msra.mxu0 %v1735
        %1745 = vmatprep.subr.mxu0 0.0
        %1746 = vmatpush1.msra.mxu0 %v1736
        %1747 = vmatprep.subr.mxu0 0.0
        %1748 = vmatpush1.msra.mxu0 0.0
        %1749 = vmatprep.subr.mxu0 0.0
        %1750 = vmatpush1.msra.mxu0 0.0
        %1751 = vmatprep.subr.mxu0 0.0
        %1752 = vmatpush1.msra.mxu0 0.0
        %1753 = vmatprep.subr.mxu0 0.0
        %1754 = vmatpush1.msra.mxu0 0.0
        %1755 = vmatprep.subr.mxu0 0.0
        %1756 = vmatpush1.msra.mxu0 0.0
        %1757 = vmatprep.subr.mxu0 0.0
        %1758 = vmatpush1.msra.mxu0 0.0
        %1759 = vmatprep.subr.mxu0 0.0
        %1760 = vmatpush1.msra.mxu0 0.0
        %1761 = vmatprep.subr.mxu0 0.0
        %1762 = vmatpush1.msra.mxu0 0.0
        %1763 = vmatprep.subr.mxu0 0.0
        %1764 = vmatpush1.msra.mxu0 0.0
        %1765 = vmatprep.subr.mxu0 0.0
        %1766 = vmatpush1.msra.mxu0 0.0
        %1767 = vmatprep.subr.mxu0 0.0
        %1768 = vmatpush1.msra.mxu0 0.0
        %1769 = vmatprep.subr.mxu0 0.0
        %1770 = vmatpush1.msra.mxu0 0.0
        %1771 = vmatprep.subr.mxu0 0.0
        %1772 = vmatpush1.msra.mxu0 0.0
        %1773 = vmatprep.subr.mxu0 0.0
        %1774 = vmatpush1.msra.mxu0 0.0
        %1775 = vmatprep.subr.mxu0 0.0
        %1776 = vmatpush1.msra.mxu0 0.0
        %1777 = vmatprep.subr.mxu0 0.0
        %1778 = vmatpush1.msra.mxu0 0.0
        %1779 = vmatprep.subr.mxu0 0.0
        %1780 = vmatpush1.msra.mxu0 0.0
        %1781 = vmatprep.subr.mxu0 0.0
        %1782 = vmatpush1.msra.mxu0 0.0
        %1783 = vmatprep.subr.mxu0 0.0
        %1784 = vmatpush1.msra.mxu0 0.0
        %1785 = vmatprep.subr.mxu0 0.0
        %1786 = vmatpush1.msra.mxu0 0.0
        %1787 = vmatprep.subr.mxu0 0.0
        %1788 = vmatpush1.msra.mxu0 0.0
        %1789 = vmatprep.subr.mxu0 0.0
        %1790 = vmatpush1.msra.mxu0 0.0
        %1791 = vmatprep.subr.mxu0 0.0
        %1792 = vmatpush1.msra.mxu0 0.0
        %1793 = vmatprep.subr.mxu0 0.0
        %1794 = vmatpush1.msra.mxu0 0.0
        %1795 = vmatprep.subr.mxu0 0.0
        %1796 = vmatpush1.msra.mxu0 0.0
        %1797 = vmatprep.subr.mxu0 0.0
        %1798 = vmatpush1.msra.mxu0 0.0
        %1799 = vmatprep.subr.mxu0 0.0
        %1800 = vmatpush1.msra.mxu0 0.0
        %1801 = vmatprep.subr.mxu0 0.0
        %1802 = vmatpush1.msra.mxu0 0.0
        %1803 = vmatprep.subr.mxu0 0.0
        %1804 = vmatpush1.msra.mxu0 0.0
        %1805 = vmatprep.subr.mxu0 0.0
        %1806 = vmatpush1.msra.mxu0 0.0
        %1807 = vmatprep.mubr.f32.mxu0 0.0
        %1808 = vmatmul.mubr.f32.gmra.mrb[0].mxu0 %v1738
        %v1809 = vpop.f32.mrb[0].mxu0
        %v1810 = vadd.f32 0.0, %v1809
        %v1811 = vpop.f32.mrb[0].mxu0
        %1812 = vmatprep.mubr.f32.mxu0 0.0
        %1813 = vmatmul.mubr.f32.gmra.mrb[0].mxu0 %v1741
        %v1814 = vpop.f32.mrb[0].mxu0
        %v1815 = vadd.f32 0.0, %v1814
        %v1816 = vpop.f32.mrb[0].mxu0
        %1817 = vdwg.mxu0
        %v1818 = vadd.f32 %v1716, %v1810
        %v1819 = vadd.f32 %v1721, %v1815
        %s1820 = scalar_lea.vmem %s10, 32
        %v1821 = vld [vmem:[%s1820] sm:$0xff]
        %v1822 = vld [vmem:[%s1820 + $0x8] sm:$0xff]
        %1823 = vrot.lane.b32.xlu0 %v1626, 124
        %v1824 = vpop.permute.xlu0 %1823
        %1825 = vrot.lane.b32.xlu0 %v1627, 124
        %v1826 = vpop.permute.xlu0 %1825
        %vm1829 = vcmask 97280
        %v1830 = vsel %vm1829, %v1824, 0.0
        %v1831 = vsel %vm1829, %v1826, 0.0
        %v1833 = vsel %vm723, %v1821, 0
        %v1836 = vsel %vm723, %v1822, 0
        %1838 = vmatprep.subr.mxu0 0.0
        %1839 = vmatpush1.msra.mxu0 %v1830
        %1840 = vmatprep.subr.mxu0 0.0
        %1841 = vmatpush1.msra.mxu0 %v1831
        %1842 = vmatprep.subr.mxu0 0.0
        %1843 = vmatpush1.msra.mxu0 0.0
        %1844 = vmatprep.subr.mxu0 0.0
        %1845 = vmatpush1.msra.mxu0 0.0
        %1846 = vmatprep.subr.mxu0 0.0
        %1847 = vmatpush1.msra.mxu0 0.0
        %1848 = vmatprep.subr.mxu0 0.0
        %1849 = vmatpush1.msra.mxu0 0.0
        %1850 = vmatprep.subr.mxu0 0.0
        %1851 = vmatpush1.msra.mxu0 0.0
        %1852 = vmatprep.subr.mxu0 0.0
        %1853 = vmatpush1.msra.mxu0 0.0
        %1854 = vmatprep.subr.mxu0 0.0
        %1855 = vmatpush1.msra.mxu0 0.0
        %1856 = vmatprep.subr.mxu0 0.0
        %1857 = vmatpush1.msra.mxu0 0.0
        %1858 = vmatprep.subr.mxu0 0.0
        %1859 = vmatpush1.msra.mxu0 0.0
        %1860 = vmatprep.subr.mxu0 0.0
        %1861 = vmatpush1.msra.mxu0 0.0
        %1862 = vmatprep.subr.mxu0 0.0
        %1863 = vmatpush1.msra.mxu0 0.0
        %1864 = vmatprep.subr.mxu0 0.0
        %1865 = vmatpush1.msra.mxu0 0.0
        %1866 = vmatprep.subr.mxu0 0.0
        %1867 = vmatpush1.msra.mxu0 0.0
        %1868 = vmatprep.subr.mxu0 0.0
        %1869 = vmatpush1.msra.mxu0 0.0
        %1870 = vmatprep.subr.mxu0 0.0
        %1871 = vmatpush1.msra.mxu0 0.0
        %1872 = vmatprep.subr.mxu0 0.0
        %1873 = vmatpush1.msra.mxu0 0.0
        %1874 = vmatprep.subr.mxu0 0.0
        %1875 = vmatpush1.msra.mxu0 0.0
        %1876 = vmatprep.subr.mxu0 0.0
        %1877 = vmatpush1.msra.mxu0 0.0
        %1878 = vmatprep.subr.mxu0 0.0
        %1879 = vmatpush1.msra.mxu0 0.0
        %1880 = vmatprep.subr.mxu0 0.0
        %1881 = vmatpush1.msra.mxu0 0.0
        %1882 = vmatprep.subr.mxu0 0.0
        %1883 = vmatpush1.msra.mxu0 0.0
        %1884 = vmatprep.subr.mxu0 0.0
        %1885 = vmatpush1.msra.mxu0 0.0
        %1886 = vmatprep.subr.mxu0 0.0
        %1887 = vmatpush1.msra.mxu0 0.0
        %1888 = vmatprep.subr.mxu0 0.0
        %1889 = vmatpush1.msra.mxu0 0.0
        %1890 = vmatprep.subr.mxu0 0.0
        %1891 = vmatpush1.msra.mxu0 0.0
        %1892 = vmatprep.subr.mxu0 0.0
        %1893 = vmatpush1.msra.mxu0 0.0
        %1894 = vmatprep.subr.mxu0 0.0
        %1895 = vmatpush1.msra.mxu0 0.0
        %1896 = vmatprep.subr.mxu0 0.0
        %1897 = vmatpush1.msra.mxu0 0.0
        %1898 = vmatprep.subr.mxu0 0.0
        %1899 = vmatpush1.msra.mxu0 0.0
        %1900 = vmatprep.subr.mxu0 0.0
        %1901 = vmatpush1.msra.mxu0 0.0
        %1902 = vmatprep.mubr.f32.mxu0 0.0
        %1903 = vmatmul.mubr.f32.gmra.mrb[0].mxu0 %v1833
        %v1904 = vpop.f32.mrb[0].mxu0
        %v1905 = vadd.f32 0.0, %v1904
        %v1906 = vpop.f32.mrb[0].mxu0
        %1907 = vmatprep.mubr.f32.mxu0 0.0
        %1908 = vmatmul.mubr.f32.gmra.mrb[0].mxu0 %v1836
        %v1909 = vpop.f32.mrb[0].mxu0
        %v1910 = vadd.f32 0.0, %v1909
        %v1911 = vpop.f32.mrb[0].mxu0
        %1912 = vdwg.mxu0
        %v1913 = vadd.f32 %v1818, %v1905
        %v1914 = vadd.f32 %v1819, %v1910
        %v1915 = vadd.f32 %v1618, %v1913
        %v1916 = vadd.f32 %v1619, %v1914
        %1917 = vst.msk [vmem:[%s445] sm:$0xff] %vm723, %v1915
        %1918 = vst.msk [vmem:[%s445 + $0x8] sm:$0xff] %vm723, %v1916
        %s1919 = sand.u32 %s314, 1
        %s1920 = scalar_lea.sflag [#allocation3], %s1919
        %s1921 = sand.u32 %s314, 1
        %s1922 = smul.addr %s1921, 16
        %s1923 = scalar_lea.vmem [#allocation5], %s1922
        // Predicated region
        $region77: #{mel_adapter_forward.1} parent=71 // pred_check
          %p1924 = pneg %p324
        $region78: #{mel_adapter_forward.1} parent=71 // pred_check_branch
          %1926 = sbr.rel (%p1924) target = $region80
        $region79: #{mel_adapter_forward.1} parent=71 // pred_region
          %s1928 = ssub.s32 256, 256
          %1929 = vsyncadd %s1920, %s1928
          %s1930 = smul.addr %s28, 2
          %s1931 = smul.addr %s1930, 128
          %s1932 = scalar_lea.hbm %s13, %s1931
          %s1933 = sshll.u32 %s1923, 4
          %s1934 = int_to_ptr.vmem [resolvable:$true] %s1933
          %1939 = dma.vmem_to_hbm [thread:$0]  %s1934, 256, %s1932, %s1920, 128, 128, 8
        $region80: #{mel_adapter_forward.1} parent=71 // pred_fallthru
          _
      $region72: #{mel_adapter_forward.1} parent=5 // pred_fallthru
        _
      %p1940 = scmp.le.s32.totalorder 2, %s23
      // Predicated region
      $region81: #{mel_adapter_forward.1} parent=5 // pred_check
        %p1941 = pneg %p1940
      $region82: #{mel_adapter_forward.1} parent=5 // pred_check_branch
        %1943 = sbr.rel (%p1941) target = $region84
      $region83: #{mel_adapter_forward.1} parent=5 // pred_region
        %s1944 = ssub.s32 %s23, 2
        // Predicated region
        $region85: #{mel_adapter_forward.1} parent=83 // pred_check
          %p1945 = pneg %p330
        $region86: #{mel_adapter_forward.1} parent=83 // pred_check_branch
          %1947 = sbr.rel (%p1945) target = $region88
        $region87: #{mel_adapter_forward.1} parent=83 // pred_region
          %s1948 = sand.u32 %s315, 1
          %s1949 = scalar_lea.sflag [#allocation3], %s1948
          %s1950 = sand.u32 %s315, 1
          %s1951 = smul.addr %s1950, 16
          %s1952 = scalar_lea.vmem [#allocation5], %s1951
          %1953 = dma.done %s1949, 256
        $region88: #{mel_adapter_forward.1} parent=83 // pred_fallthru
          _
      $region84: #{mel_adapter_forward.1} parent=5 // pred_fallthru
        _
    $region6: #{mel_adapter_forward.1} parent=1 // loop_footer
      %s27 = sadd.s32 1, %s23
    $region7: #{mel_adapter_forward.1} parent=1 // loop_footer_branch
      %22 = sbr.rel target = $region3
    $region8: #{mel_adapter_forward.1} parent=1 // loop_exit
      _
    %1954 = vsyncpa [#allocation3], 1
    %s1955 = scalar_lea.sflag [#allocation3], 1
    %1956 = vsyncpa %s1955, 1
    %1957 = vsyncpa [#allocation4], 1
    %s1958 = scalar_lea.sflag [#allocation4], 1
    %1959 = vsyncpa %s1958, 1

</llo_original>
